<compile_context>
chip_gen: v7x
topology: tpu7x:2x2x1
jax: 0.10.0
libtpu: 0.0.40
codegen_flags: <defaults>
</compile_context>

<pallas_src>
import math
from functools import partial

import jax
import jax.numpy as jnp
from jax.experimental import pallas as pl
from jax.experimental.pallas import tpu as pltpu

# ----------------------------- configuration --------------------------------
HIDDEN = 128          # config.hidden_size
NUM_HEADS = 4         # config.num_attention_heads
HEAD_DIM = HIDDEN // NUM_HEADS
BS = 8                # batch size
SEQ = 16              # token sequence length
VOCAB = 64            # synthetic vocab
PAD_ID = 1            # attention_mask = inputs.ne(1)

_DOT_T = (((1,), (1,)), ((), ()))   # contract last dims => a @ b.T on the MXU


# ------------------------------ fused Pallas kernel ---------------------------
def _fused_head_kernel(pooled_ref, wp_ref, bp_ref,
                       wq_ref, bq_ref, wk_ref, bk_ref,
                       wv_ref, bv_ref, wo_ref, bo_ref,
                       wfc_ref, bfc_ref,
                       code_out_ref, nl_out_ref, loss_ref,
                       *, bs, num_heads, head_dim):
    f32 = jnp.float32
    bf16 = jnp.bfloat16

    # ---- encoder pooler: outputs = tanh(pooled @ wp + bp) -------------------
    pooled = pooled_ref[...]                                     # (2*bs, H) f32
    outputs = jnp.tanh(
        jnp.dot(pooled.astype(bf16), wp_ref[...], preferred_element_type=f32)
        + bp_ref[...])
    code_vec = outputs[:bs]                                      # (bs, H) f32
    nl_vec = outputs[bs:]                                        # (bs, H) f32
    code_b = code_vec.astype(bf16)
    nl_b = nl_vec.astype(bf16)

    # ---- multi-head cross attention: query = nl, key = value = code ---------
    # TODO(synk): CustomCrossAttention's input convention is not given; the
    # (1, bs, H) inputs are interpreted as (batch=1, seq=bs, H) so every nl
    # query attends over all bs code keys (scaled dot-product, no mask).
    q = jnp.dot(nl_b, wq_ref[...], preferred_element_type=f32) + bq_ref[...]
    k = jnp.dot(code_b, wk_ref[...], preferred_element_type=f32) + bk_ref[...]
    v = jnp.dot(code_b, wv_ref[...], preferred_element_type=f32) + bv_ref[...]

    scale = 1.0 / math.sqrt(head_dim)
    s_blocks = []
    for h in range(num_heads):                       # static loop, static slices
        sl = slice(h * head_dim, (h + 1) * head_dim)
        qh = q[:, sl].astype(bf16)                   # (bs, hd)
        kh = k[:, sl].astype(bf16)                   # (bs, hd)
        s_blocks.append(
            jax.lax.dot_general(qh, kh, _DOT_T, preferred_element_type=f32))
    # stacked-head softmax: one max/exp/sum pass over (num_heads*bs, bs)
    s = jnp.concatenate(s_blocks, axis=0) * scale
    s = s - jnp.max(s, axis=-1, keepdims=True)
    p = jnp.exp(s)
    p = p * pl.reciprocal(jnp.sum(p, axis=-1, keepdims=True), approx=True)

    # accumulate per-head (p_h @ v_h) @ wo[h*hd:(h+1)*hd, :]  (no lane concat)
    wo = wo_ref[...]
    attn = jnp.zeros_like(code_vec)
    for h in range(num_heads):
        sl = slice(h * head_dim, (h + 1) * head_dim)
        ph = p[h * bs:(h + 1) * bs, :].astype(bf16)              # (bs, bs)
        vh = v[:, sl].astype(bf16)                               # (bs, hd)
        oh = jnp.dot(ph, vh, preferred_element_type=f32)         # (bs, hd)
        attn = attn + jnp.dot(oh.astype(bf16), wo[sl, :],
                              preferred_element_type=f32)        # (bs, H)
    attn = attn + bo_ref[...]

    # ---- cat + fc + GELU: split w_fc row blocks instead of concatenating ----
    wfc = wfc_ref[...]                                           # (2H, H)
    hdim = wfc.shape[1]
    y = (jnp.dot(code_b, wfc[:hdim, :], preferred_element_type=f32)
         + jnp.dot(attn.astype(bf16), wfc[hdim:, :], preferred_element_type=f32)
         + bfc_ref[...])
    # TODO(synk): torch.nn.GELU() default is erf-exact; tanh approximation used
    # here (max err ~1e-3) to keep Mosaic lowering simple.
    c = math.sqrt(2.0 / math.pi)
    code_out = 0.5 * y * (1.0 + jnp.tanh(c * (y + 0.044715 * y * y * y)))

    code_out_ref[...] = code_out
    nl_out_ref[...] = nl_vec

    # ---- scores = nl @ code_out.T ; loss = CrossEntropy(scores, arange(bs)) --
    s2 = jax.lax.dot_general(nl_b, code_out.astype(bf16), _DOT_T,
                             preferred_element_type=f32)         # (bs, bs)
    m = jnp.max(s2, axis=-1, keepdims=True)
    lse = m + jnp.log(jnp.sum(jnp.exp(s2 - m), axis=-1, keepdims=True))
    row = jax.lax.broadcasted_iota(jnp.int32, s2.shape, 0)
    col = jax.lax.broadcasted_iota(jnp.int32, s2.shape, 1)
    diag = jnp.sum(jnp.where(row == col, s2, 0.0), axis=-1, keepdims=True)
    loss_ref[0, 0] = jnp.sum(lse - diag) * (1.0 / bs)


def fused_head(pooled, p):
    """Single pallas_call: pooler + cross-attn + fc/GELU + scores/CE."""
    bs2, hdim = pooled.shape
    bs = bs2 // 2
    kernel = partial(_fused_head_kernel, bs=bs,
                     num_heads=NUM_HEADS, head_dim=HEAD_DIM)
    code_out, nl_out, loss = pl.pallas_call(
        kernel,
        out_shape=(
            jax.ShapeDtypeStruct((bs, hdim), jnp.float32),   # code_vec_out
            jax.ShapeDtypeStruct((bs, hdim), jnp.float32),   # nl_vec
            jax.ShapeDtypeStruct((1, 1), jnp.float32),       # loss scalar
        ),
        out_specs=(
            pl.BlockSpec(memory_space=pltpu.MemorySpace.VMEM),
            pl.BlockSpec(memory_space=pltpu.MemorySpace.VMEM),
            pl.BlockSpec(memory_space=pltpu.MemorySpace.SMEM),
        ),
    )(pooled, p["wp"], p["bp"],
      p["wq"], p["bq"], p["wk"], p["bk"],
      p["wv"], p["bv"], p["wo"], p["bo"],
      p["w_fc"], p["b_fc"])
    return loss[0, 0], code_out, nl_out


# ------------------------------ parameters -----------------------------------
def init_params(key):
    ks = jax.random.split(key, 8)
    s = 0.02

    def n(k, shape, dtype=jnp.bfloat16):   # bf16 weights feed the MXU natively
        return (jax.random.normal(k, shape, jnp.float32) * s).astype(dtype)

    zeros = lambda shape: jnp.zeros(shape, jnp.float32)
    return {
        # synthetic encoder stand-in
        "emb": n(ks[0], (VOCAB, HIDDEN), jnp.float32),
        "wp":  n(ks[1], (HIDDEN, HIDDEN)), "bp": zeros((1, HIDDEN)),
        # cross attention projections
        "wq": n(ks[2], (HIDDEN, HIDDEN)), "bq": zeros((1, HIDDEN)),
        "wk": n(ks[3], (HIDDEN, HIDDEN)), "bk": zeros((1, HIDDEN)),
        "wv": n(ks[4], (HIDDEN, HIDDEN)), "bv": zeros((1, HIDDEN)),
        "wo": n(ks[5], (HIDDEN, HIDDEN)), "bo": zeros((1, HIDDEN)),
        # fc : Linear(2H -> H)
        "w_fc": n(ks[6], (2 * HIDDEN, HIDDEN)), "b_fc": zeros((1, HIDDEN)),
    }


# ------------------------------ model forward --------------------------------
def model_forward(params, code_inputs, nl_inputs, return_vec=False):
    bs = code_inputs.shape[0]
    inputs = jnp.concatenate([code_inputs, nl_inputs], axis=0)      # (2*bs, seq)

    # TODO(synk): real module uses an external RoBERTa `encoder`; stand-in here
    # is embedding + masked mean pool (XLA glue); the tanh pooler matmul runs
    # inside the fused Pallas kernel.
    mask = (inputs != PAD_ID).astype(jnp.float32)                    # inputs.ne(1)
    emb = params["emb"][inputs]                                      # (2*bs, seq, H)
    pooled = (emb * mask[..., None]).sum(1) / jnp.maximum(
        mask.sum(1, keepdims=True), 1.0)                             # (2*bs, H)

    loss, code_vec_out, nl_vec = fused_head(pooled, params)

    if return_vec:
        return None, code_vec_out, nl_vec
    return loss, code_vec_out, nl_vec


# ---------------------------------- main --------------------------------------
if __name__ == "__main__":
    key = jax.random.PRNGKey(0)
    pkey, ckey, nkey = jax.random.split(key, 3)
    params = init_params(pkey)

    code_inputs = jax.random.randint(ckey, (BS, SEQ), 0, VOCAB, dtype=jnp.int32)
    nl_inputs = jax.random.randint(nkey, (BS, SEQ), 0, VOCAB, dtype=jnp.int32)

    fwd = jax.jit(lambda p, c, n: model_forward(p, c, n))
    loss, code_vec, nl_vec = fwd(params, code_inputs, nl_inputs)
    jax.block_until_ready((loss, code_vec, nl_vec))

    assert code_vec.shape == (BS, HIDDEN)
    assert nl_vec.shape == (BS, HIDDEN)
    assert loss.shape == ()
    print("KERNEL_OK")
</pallas_src>

<mosaic_0001>
module attributes {stable_mosaic.version = 11 : i64} {
  func.func @_fused_head_kernel(%arg0: memref<16x128xf32, #tpu.memory_space<vmem>>, %arg1: memref<128x128xbf16, #tpu.memory_space<vmem>>, %arg2: memref<1x128xf32, #tpu.memory_space<vmem>>, %arg3: memref<128x128xbf16, #tpu.memory_space<vmem>>, %arg4: memref<1x128xf32, #tpu.memory_space<vmem>>, %arg5: memref<128x128xbf16, #tpu.memory_space<vmem>>, %arg6: memref<1x128xf32, #tpu.memory_space<vmem>>, %arg7: memref<128x128xbf16, #tpu.memory_space<vmem>>, %arg8: memref<1x128xf32, #tpu.memory_space<vmem>>, %arg9: memref<128x128xbf16, #tpu.memory_space<vmem>>, %arg10: memref<1x128xf32, #tpu.memory_space<vmem>>, %arg11: memref<256x128xbf16, #tpu.memory_space<vmem>>, %arg12: memref<1x128xf32, #tpu.memory_space<vmem>>, %arg13: memref<8x128xf32, #tpu.memory_space<vmem>>, %arg14: memref<8x128xf32, #tpu.memory_space<vmem>>, %arg15: memref<1x1xf32, #tpu.memory_space<smem>>) attributes {dimension_semantics = [], scalar_prefetch = 0 : i64, scratch_operands = 0 : i64, tpu.core_type = #tpu.core_type<tc>} {
    %c0 = arith.constant 0 : index
    %c0_0 = arith.constant 0 : index
    %0 = vector.load %arg0[%c0, %c0_0] : memref<16x128xf32, #tpu.memory_space<vmem>>, vector<16x128xf32>
    %1 = arith.truncf %0 : vector<16x128xf32> to vector<16x128xbf16>
    %c0_1 = arith.constant 0 : index
    %c0_2 = arith.constant 0 : index
    %2 = vector.load %arg1[%c0_1, %c0_2] : memref<128x128xbf16, #tpu.memory_space<vmem>>, vector<128x128xbf16>
    %cst = arith.constant dense<0.000000e+00> : vector<16x128xf32>
    %3 = tpu.matmul %1, %2, %cst {dimension_numbers = #tpu.dot_dimension_numbers<[1], [0], [0], [1], [0, 0, 1, 1], [], []>} : vector<16x128xbf16>, vector<128x128xbf16>, vector<16x128xf32> -> vector<16x128xf32>
    %c0_3 = arith.constant 0 : index
    %c0_4 = arith.constant 0 : index
    %4 = vector.load %arg2[%c0_3, %c0_4] : memref<1x128xf32, #tpu.memory_space<vmem>>, vector<1x128xf32>
    %5 = vector.broadcast %4 : vector<1x128xf32> to vector<16x128xf32>
    %6 = arith.addf %3, %5 : vector<16x128xf32>
    %7 = math.tanh %6 : vector<16x128xf32>
    %8 = vector.extract_strided_slice %7 {offsets = [0, 0], sizes = [8, 128], strides = [1, 1]} : vector<16x128xf32> to vector<8x128xf32>
    %9 = vector.extract_strided_slice %7 {offsets = [8, 0], sizes = [8, 128], strides = [1, 1]} : vector<16x128xf32> to vector<8x128xf32>
    %10 = arith.truncf %8 : vector<8x128xf32> to vector<8x128xbf16>
    %11 = arith.truncf %9 : vector<8x128xf32> to vector<8x128xbf16>
    %c0_5 = arith.constant 0 : index
    %c0_6 = arith.constant 0 : index
    %12 = vector.load %arg3[%c0_5, %c0_6] : memref<128x128xbf16, #tpu.memory_space<vmem>>, vector<128x128xbf16>
    %cst_7 = arith.constant dense<0.000000e+00> : vector<8x128xf32>
    %13 = tpu.matmul %11, %12, %cst_7 {dimension_numbers = #tpu.dot_dimension_numbers<[1], [0], [0], [1], [0, 0, 1, 1], [], []>} : vector<8x128xbf16>, vector<128x128xbf16>, vector<8x128xf32> -> vector<8x128xf32>
    %c0_8 = arith.constant 0 : index
    %c0_9 = arith.constant 0 : index
    %14 = vector.load %arg4[%c0_8, %c0_9] : memref<1x128xf32, #tpu.memory_space<vmem>>, vector<1x128xf32>
    %15 = vector.broadcast %14 : vector<1x128xf32> to vector<8x128xf32>
    %16 = arith.addf %13, %15 : vector<8x128xf32>
    %c0_10 = arith.constant 0 : index
    %c0_11 = arith.constant 0 : index
    %17 = vector.load %arg5[%c0_10, %c0_11] : memref<128x128xbf16, #tpu.memory_space<vmem>>, vector<128x128xbf16>
    %cst_12 = arith.constant dense<0.000000e+00> : vector<8x128xf32>
    %18 = tpu.matmul %10, %17, %cst_12 {dimension_numbers = #tpu.dot_dimension_numbers<[1], [0], [0], [1], [0, 0, 1, 1], [], []>} : vector<8x128xbf16>, vector<128x128xbf16>, vector<8x128xf32> -> vector<8x128xf32>
    %c0_13 = arith.constant 0 : index
    %c0_14 = arith.constant 0 : index
    %19 = vector.load %arg6[%c0_13, %c0_14] : memref<1x128xf32, #tpu.memory_space<vmem>>, vector<1x128xf32>
    %20 = vector.broadcast %19 : vector<1x128xf32> to vector<8x128xf32>
    %21 = arith.addf %18, %20 : vector<8x128xf32>
    %c0_15 = arith.constant 0 : index
    %c0_16 = arith.constant 0 : index
    %22 = vector.load %arg7[%c0_15, %c0_16] : memref<128x128xbf16, #tpu.memory_space<vmem>>, vector<128x128xbf16>
    %cst_17 = arith.constant dense<0.000000e+00> : vector<8x128xf32>
    %23 = tpu.matmul %10, %22, %cst_17 {dimension_numbers = #tpu.dot_dimension_numbers<[1], [0], [0], [1], [0, 0, 1, 1], [], []>} : vector<8x128xbf16>, vector<128x128xbf16>, vector<8x128xf32> -> vector<8x128xf32>
    %c0_18 = arith.constant 0 : index
    %c0_19 = arith.constant 0 : index
    %24 = vector.load %arg8[%c0_18, %c0_19] : memref<1x128xf32, #tpu.memory_space<vmem>>, vector<1x128xf32>
    %25 = vector.broadcast %24 : vector<1x128xf32> to vector<8x128xf32>
    %26 = arith.addf %23, %25 : vector<8x128xf32>
    %27 = vector.extract_strided_slice %16 {offsets = [0, 0], sizes = [8, 32], strides = [1, 1]} : vector<8x128xf32> to vector<8x32xf32>
    %28 = arith.truncf %27 : vector<8x32xf32> to vector<8x32xbf16>
    %29 = vector.extract_strided_slice %21 {offsets = [0, 0], sizes = [8, 32], strides = [1, 1]} : vector<8x128xf32> to vector<8x32xf32>
    %30 = arith.truncf %29 : vector<8x32xf32> to vector<8x32xbf16>
    %cst_20 = arith.constant dense<0.000000e+00> : vector<8x8xf32>
    %31 = tpu.matmul %28, %30, %cst_20 {dimension_numbers = #tpu.dot_dimension_numbers<[1], [1], [0], [0], [0, 0, 1, 0], [], []>} : vector<8x32xbf16>, vector<8x32xbf16>, vector<8x8xf32> -> vector<8x8xf32>
    %32 = vector.extract_strided_slice %16 {offsets = [0, 32], sizes = [8, 32], strides = [1, 1]} : vector<8x128xf32> to vector<8x32xf32>
    %33 = arith.truncf %32 : vector<8x32xf32> to vector<8x32xbf16>
    %34 = vector.extract_strided_slice %21 {offsets = [0, 32], sizes = [8, 32], strides = [1, 1]} : vector<8x128xf32> to vector<8x32xf32>
    %35 = arith.truncf %34 : vector<8x32xf32> to vector<8x32xbf16>
    %cst_21 = arith.constant dense<0.000000e+00> : vector<8x8xf32>
    %36 = tpu.matmul %33, %35, %cst_21 {dimension_numbers = #tpu.dot_dimension_numbers<[1], [1], [0], [0], [0, 0, 1, 0], [], []>} : vector<8x32xbf16>, vector<8x32xbf16>, vector<8x8xf32> -> vector<8x8xf32>
    %37 = vector.extract_strided_slice %16 {offsets = [0, 64], sizes = [8, 32], strides = [1, 1]} : vector<8x128xf32> to vector<8x32xf32>
    %38 = arith.truncf %37 : vector<8x32xf32> to vector<8x32xbf16>
    %39 = vector.extract_strided_slice %21 {offsets = [0, 64], sizes = [8, 32], strides = [1, 1]} : vector<8x128xf32> to vector<8x32xf32>
    %40 = arith.truncf %39 : vector<8x32xf32> to vector<8x32xbf16>
    %cst_22 = arith.constant dense<0.000000e+00> : vector<8x8xf32>
    %41 = tpu.matmul %38, %40, %cst_22 {dimension_numbers = #tpu.dot_dimension_numbers<[1], [1], [0], [0], [0, 0, 1, 0], [], []>} : vector<8x32xbf16>, vector<8x32xbf16>, vector<8x8xf32> -> vector<8x8xf32>
    %42 = vector.extract_strided_slice %16 {offsets = [0, 96], sizes = [8, 32], strides = [1, 1]} : vector<8x128xf32> to vector<8x32xf32>
    %43 = arith.truncf %42 : vector<8x32xf32> to vector<8x32xbf16>
    %44 = vector.extract_strided_slice %21 {offsets = [0, 96], sizes = [8, 32], strides = [1, 1]} : vector<8x128xf32> to vector<8x32xf32>
    %45 = arith.truncf %44 : vector<8x32xf32> to vector<8x32xbf16>
    %cst_23 = arith.constant dense<0.000000e+00> : vector<8x8xf32>
    %46 = tpu.matmul %43, %45, %cst_23 {dimension_numbers = #tpu.dot_dimension_numbers<[1], [1], [0], [0], [0, 0, 1, 0], [], []>} : vector<8x32xbf16>, vector<8x32xbf16>, vector<8x8xf32> -> vector<8x8xf32>
    %47 = tpu.concatenate %31, %36, %41, %46 in 0 : vector<8x8xf32>, vector<8x8xf32>, vector<8x8xf32>, vector<8x8xf32> -> vector<32x8xf32>
    %cst_24 = arith.constant 0.176776692 : f32
    %48 = vector.broadcast %cst_24 : f32 to vector<32x8xf32>
    %49 = arith.mulf %47, %48 : vector<32x8xf32>
    %cst_25 = arith.constant dense<0xFF800000> : vector<32xf32>
    %50 = vector.multi_reduction <maximumf>, %49, %cst_25 [1] : vector<32x8xf32> to vector<32xf32>
    %51 = vector.shape_cast %50 : vector<32xf32> to vector<32x1xf32>
    %52 = vector.broadcast %51 : vector<32x1xf32> to vector<32x8xf32>
    %53 = arith.subf %49, %52 : vector<32x8xf32>
    %54 = math.exp %53 : vector<32x8xf32>
    %cst_26 = arith.constant dense<0.000000e+00> : vector<32xf32>
    %55 = vector.multi_reduction <add>, %54, %cst_26 [1] : vector<32x8xf32> to vector<32xf32>
    %56 = vector.shape_cast %55 : vector<32xf32> to vector<32x1xf32>
    %57 = tpu.reciprocal %56 {approx = true} : vector<32x1xf32> -> vector<32x1xf32>
    %58 = vector.broadcast %57 : vector<32x1xf32> to vector<32x8xf32>
    %59 = arith.mulf %54, %58 : vector<32x8xf32>
    %c0_27 = arith.constant 0 : index
    %c0_28 = arith.constant 0 : index
    %60 = vector.load %arg9[%c0_27, %c0_28] : memref<128x128xbf16, #tpu.memory_space<vmem>>, vector<128x128xbf16>
    %cst_29 = arith.constant 0.000000e+00 : f32
    %61 = vector.broadcast %cst_29 : f32 to vector<8x128xf32>
    %62 = vector.extract_strided_slice %59 {offsets = [0, 0], sizes = [8, 8], strides = [1, 1]} : vector<32x8xf32> to vector<8x8xf32>
    %63 = arith.truncf %62 : vector<8x8xf32> to vector<8x8xbf16>
    %64 = vector.extract_strided_slice %26 {offsets = [0, 0], sizes = [8, 32], strides = [1, 1]} : vector<8x128xf32> to vector<8x32xf32>
    %65 = arith.truncf %64 : vector<8x32xf32> to vector<8x32xbf16>
    %cst_30 = arith.constant dense<0.000000e+00> : vector<8x32xf32>
    %66 = tpu.matmul %63, %65, %cst_30 {dimension_numbers = #tpu.dot_dimension_numbers<[1], [0], [0], [1], [0, 0, 1, 1], [], []>} : vector<8x8xbf16>, vector<8x32xbf16>, vector<8x32xf32> -> vector<8x32xf32>
    %67 = arith.truncf %66 : vector<8x32xf32> to vector<8x32xbf16>
    %68 = vector.extract_strided_slice %60 {offsets = [0, 0], sizes = [32, 128], strides = [1, 1]} : vector<128x128xbf16> to vector<32x128xbf16>
    %cst_31 = arith.constant dense<0.000000e+00> : vector<8x128xf32>
    %69 = tpu.matmul %67, %68, %cst_31 {dimension_numbers = #tpu.dot_dimension_numbers<[1], [0], [0], [1], [0, 0, 1, 1], [], []>} : vector<8x32xbf16>, vector<32x128xbf16>, vector<8x128xf32> -> vector<8x128xf32>
    %70 = arith.addf %61, %69 : vector<8x128xf32>
    %71 = vector.extract_strided_slice %59 {offsets = [8, 0], sizes = [8, 8], strides = [1, 1]} : vector<32x8xf32> to vector<8x8xf32>
    %72 = arith.truncf %71 : vector<8x8xf32> to vector<8x8xbf16>
    %73 = vector.extract_strided_slice %26 {offsets = [0, 32], sizes = [8, 32], strides = [1, 1]} : vector<8x128xf32> to vector<8x32xf32>
    %74 = arith.truncf %73 : vector<8x32xf32> to vector<8x32xbf16>
    %cst_32 = arith.constant dense<0.000000e+00> : vector<8x32xf32>
    %75 = tpu.matmul %72, %74, %cst_32 {dimension_numbers = #tpu.dot_dimension_numbers<[1], [0], [0], [1], [0, 0, 1, 1], [], []>} : vector<8x8xbf16>, vector<8x32xbf16>, vector<8x32xf32> -> vector<8x32xf32>
    %76 = arith.truncf %75 : vector<8x32xf32> to vector<8x32xbf16>
    %77 = vector.extract_strided_slice %60 {offsets = [32, 0], sizes = [32, 128], strides = [1, 1]} : vector<128x128xbf16> to vector<32x128xbf16>
    %cst_33 = arith.constant dense<0.000000e+00> : vector<8x128xf32>
    %78 = tpu.matmul %76, %77, %cst_33 {dimension_numbers = #tpu.dot_dimension_numbers<[1], [0], [0], [1], [0, 0, 1, 1], [], []>} : vector<8x32xbf16>, vector<32x128xbf16>, vector<8x128xf32> -> vector<8x128xf32>
    %79 = arith.addf %70, %78 : vector<8x128xf32>
    %80 = vector.extract_strided_slice %59 {offsets = [16, 0], sizes = [8, 8], strides = [1, 1]} : vector<32x8xf32> to vector<8x8xf32>
    %81 = arith.truncf %80 : vector<8x8xf32> to vector<8x8xbf16>
    %82 = vector.extract_strided_slice %26 {offsets = [0, 64], sizes = [8, 32], strides = [1, 1]} : vector<8x128xf32> to vector<8x32xf32>
    %83 = arith.truncf %82 : vector<8x32xf32> to vector<8x32xbf16>
    %cst_34 = arith.constant dense<0.000000e+00> : vector<8x32xf32>
    %84 = tpu.matmul %81, %83, %cst_34 {dimension_numbers = #tpu.dot_dimension_numbers<[1], [0], [0], [1], [0, 0, 1, 1], [], []>} : vector<8x8xbf16>, vector<8x32xbf16>, vector<8x32xf32> -> vector<8x32xf32>
    %85 = arith.truncf %84 : vector<8x32xf32> to vector<8x32xbf16>
    %86 = vector.extract_strided_slice %60 {offsets = [64, 0], sizes = [32, 128], strides = [1, 1]} : vector<128x128xbf16> to vector<32x128xbf16>
    %cst_35 = arith.constant dense<0.000000e+00> : vector<8x128xf32>
    %87 = tpu.matmul %85, %86, %cst_35 {dimension_numbers = #tpu.dot_dimension_numbers<[1], [0], [0], [1], [0, 0, 1, 1], [], []>} : vector<8x32xbf16>, vector<32x128xbf16>, vector<8x128xf32> -> vector<8x128xf32>
    %88 = arith.addf %79, %87 : vector<8x128xf32>
    %89 = vector.extract_strided_slice %59 {offsets = [24, 0], sizes = [8, 8], strides = [1, 1]} : vector<32x8xf32> to vector<8x8xf32>
    %90 = arith.truncf %89 : vector<8x8xf32> to vector<8x8xbf16>
    %91 = vector.extract_strided_slice %26 {offsets = [0, 96], sizes = [8, 32], strides = [1, 1]} : vector<8x128xf32> to vector<8x32xf32>
    %92 = arith.truncf %91 : vector<8x32xf32> to vector<8x32xbf16>
    %cst_36 = arith.constant dense<0.000000e+00> : vector<8x32xf32>
    %93 = tpu.matmul %90, %92, %cst_36 {dimension_numbers = #tpu.dot_dimension_numbers<[1], [0], [0], [1], [0, 0, 1, 1], [], []>} : vector<8x8xbf16>, vector<8x32xbf16>, vector<8x32xf32> -> vector<8x32xf32>
    %94 = arith.truncf %93 : vector<8x32xf32> to vector<8x32xbf16>
    %95 = vector.extract_strided_slice %60 {offsets = [96, 0], sizes = [32, 128], strides = [1, 1]} : vector<128x128xbf16> to vector<32x128xbf16>
    %cst_37 = arith.constant dense<0.000000e+00> : vector<8x128xf32>
    %96 = tpu.matmul %94, %95, %cst_37 {dimension_numbers = #tpu.dot_dimension_numbers<[1], [0], [0], [1], [0, 0, 1, 1], [], []>} : vector<8x32xbf16>, vector<32x128xbf16>, vector<8x128xf32> -> vector<8x128xf32>
    %97 = arith.addf %88, %96 : vector<8x128xf32>
    %c0_38 = arith.constant 0 : index
    %c0_39 = arith.constant 0 : index
    %98 = vector.load %arg10[%c0_38, %c0_39] : memref<1x128xf32, #tpu.memory_space<vmem>>, vector<1x128xf32>
    %99 = vector.broadcast %98 : vector<1x128xf32> to vector<8x128xf32>
    %100 = arith.addf %97, %99 : vector<8x128xf32>
    %c0_40 = arith.constant 0 : index
    %c0_41 = arith.constant 0 : index
    %101 = vector.load %arg11[%c0_40, %c0_41] : memref<256x128xbf16, #tpu.memory_space<vmem>>, vector<256x128xbf16>
    %102 = vector.extract_strided_slice %101 {offsets = [0, 0], sizes = [128, 128], strides = [1, 1]} : vector<256x128xbf16> to vector<128x128xbf16>
    %cst_42 = arith.constant dense<0.000000e+00> : vector<8x128xf32>
    %103 = tpu.matmul %10, %102, %cst_42 {dimension_numbers = #tpu.dot_dimension_numbers<[1], [0], [0], [1], [0, 0, 1, 1], [], []>} : vector<8x128xbf16>, vector<128x128xbf16>, vector<8x128xf32> -> vector<8x128xf32>
    %104 = arith.truncf %100 : vector<8x128xf32> to vector<8x128xbf16>
    %105 = vector.extract_strided_slice %101 {offsets = [128, 0], sizes = [128, 128], strides = [1, 1]} : vector<256x128xbf16> to vector<128x128xbf16>
    %cst_43 = arith.constant dense<0.000000e+00> : vector<8x128xf32>
    %106 = tpu.matmul %104, %105, %cst_43 {dimension_numbers = #tpu.dot_dimension_numbers<[1], [0], [0], [1], [0, 0, 1, 1], [], []>} : vector<8x128xbf16>, vector<128x128xbf16>, vector<8x128xf32> -> vector<8x128xf32>
    %107 = arith.addf %103, %106 : vector<8x128xf32>
    %c0_44 = arith.constant 0 : index
    %c0_45 = arith.constant 0 : index
    %108 = vector.load %arg12[%c0_44, %c0_45] : memref<1x128xf32, #tpu.memory_space<vmem>>, vector<1x128xf32>
    %109 = vector.broadcast %108 : vector<1x128xf32> to vector<8x128xf32>
    %110 = arith.addf %107, %109 : vector<8x128xf32>
    %cst_46 = arith.constant 5.000000e-01 : f32
    %111 = vector.broadcast %cst_46 : f32 to vector<8x128xf32>
    %112 = arith.mulf %111, %110 : vector<8x128xf32>
    %cst_47 = arith.constant 4.471500e-02 : f32
    %113 = vector.broadcast %cst_47 : f32 to vector<8x128xf32>
    %114 = arith.mulf %113, %110 : vector<8x128xf32>
    %115 = arith.mulf %114, %110 : vector<8x128xf32>
    %116 = arith.mulf %115, %110 : vector<8x128xf32>
    %117 = arith.addf %110, %116 : vector<8x128xf32>
    %cst_48 = arith.constant 0.797884583 : f32
    %118 = vector.broadcast %cst_48 : f32 to vector<8x128xf32>
    %119 = arith.mulf %118, %117 : vector<8x128xf32>
    %120 = math.tanh %119 : vector<8x128xf32>
    %cst_49 = arith.constant 1.000000e+00 : f32
    %121 = vector.broadcast %cst_49 : f32 to vector<8x128xf32>
    %122 = arith.addf %121, %120 : vector<8x128xf32>
    %123 = arith.mulf %112, %122 : vector<8x128xf32>
    %c0_50 = arith.constant 0 : index
    %c0_51 = arith.constant 0 : index
    %124 = vector.load %arg13[%c0_50, %c0_51] : memref<8x128xf32, #tpu.memory_space<vmem>>, vector<8x128xf32>
    tpu.vector_store %arg13[%c0_50, %c0_51], %123 {strides = array<i32>} : memref<8x128xf32, #tpu.memory_space<vmem>>, vector<8x128xf32>,
    %c0_52 = arith.constant 0 : index
    %c0_53 = arith.constant 0 : index
    %125 = vector.load %arg14[%c0_52, %c0_53] : memref<8x128xf32, #tpu.memory_space<vmem>>, vector<8x128xf32>
    tpu.vector_store %arg14[%c0_52, %c0_53], %9 {strides = array<i32>} : memref<8x128xf32, #tpu.memory_space<vmem>>, vector<8x128xf32>,
    %126 = arith.truncf %123 : vector<8x128xf32> to vector<8x128xbf16>
    %cst_54 = arith.constant dense<0.000000e+00> : vector<8x8xf32>
    %127 = tpu.matmul %11, %126, %cst_54 {dimension_numbers = #tpu.dot_dimension_numbers<[1], [1], [0], [0], [0, 0, 1, 0], [], []>} : vector<8x128xbf16>, vector<8x128xbf16>, vector<8x8xf32> -> vector<8x8xf32>
    %cst_55 = arith.constant dense<0xFF800000> : vector<8xf32>
    %128 = vector.multi_reduction <maximumf>, %127, %cst_55 [1] : vector<8x8xf32> to vector<8xf32>
    %129 = vector.shape_cast %128 : vector<8xf32> to vector<8x1xf32>
    %130 = vector.broadcast %129 : vector<8x1xf32> to vector<8x8xf32>
    %131 = arith.subf %127, %130 : vector<8x8xf32>
    %132 = math.exp %131 : vector<8x8xf32>
    %cst_56 = arith.constant dense<0.000000e+00> : vector<8xf32>
    %133 = vector.multi_reduction <add>, %132, %cst_56 [1] : vector<8x8xf32> to vector<8xf32>
    %134 = vector.shape_cast %133 : vector<8xf32> to vector<8x1xf32>
    %135 = math.log %134 : vector<8x1xf32>
    %136 = arith.addf %129, %135 : vector<8x1xf32>
    %137 = tpu.iota {dimensions = array<i32: 0>} : vector<8x8xi32>
    %138 = tpu.iota {dimensions = array<i32: 1>} : vector<8x8xi32>
    %139 = arith.cmpi eq, %137, %138 : vector<8x8xi32>
    %cst_57 = arith.constant 0.000000e+00 : f32
    %140 = vector.broadcast %cst_57 : f32 to vector<8x8xf32>
    %141 = arith.select %139, %127, %140 : vector<8x8xi1>, vector<8x8xf32>
    %cst_58 = arith.constant dense<0.000000e+00> : vector<8xf32>
    %142 = vector.multi_reduction <add>, %141, %cst_58 [1] : vector<8x8xf32> to vector<8xf32>
    %143 = vector.shape_cast %142 : vector<8xf32> to vector<8x1xf32>
    %144 = arith.subf %136, %143 : vector<8x1xf32>
    %145 = vector.shape_cast %144 : vector<8x1xf32> to vector<1x8x1xf32>
    %cst_59 = arith.constant dense<0.000000e+00> : vector<1xf32>
    %146 = vector.multi_reduction <add>, %145, %cst_59 [1, 2] : vector<1x8x1xf32> to vector<1xf32>
    %147 = vector.shape_cast %146 : vector<1xf32> to vector<1x1x1xf32>
    %148 = vector.extract %147[0, 0, 0] : f32 from vector<1x1x1xf32>
    %cst_60 = arith.constant 1.250000e-01 : f32
    %149 = arith.mulf %148, %cst_60 : f32
    %c0_61 = arith.constant 0 : index
    %c0_62 = arith.constant 0 : index
    %150 = memref.load %arg15[%c0_61, %c0_62] : memref<1x1xf32, #tpu.memory_space<smem>>
    memref.store %149, %arg15[%c0_61, %c0_62] : memref<1x1xf32, #tpu.memory_space<smem>>
    return
  }
}

</mosaic_0001>

<llo_original>
// kernel: _lambda_.1
$region0: #{_lambda_.1}
  #allocation0 [shape = 'u32[]', space=smem, size = 0x4, offset = 0x4, fixed_abs, tag = 'smem constant byte address 0x4 - core index']
  #allocation1 [shape = 'u32[144,128]{1,0:T(1,128)}', space=vmem, size = 0x12000, scoped, tag = 'internal scratch']
  %s0 = inlined_call_operand.vmem [shape: f32[16,128], index: 0, kind: input, shape index: {}]
  %s1 = inlined_call_operand.vmem [shape: bf16[128,128], index: 1, kind: input, shape index: {}]
  %s2 = inlined_call_operand.vmem [shape: f32[1,128], index: 2, kind: input, shape index: {}]
  %s3 = inlined_call_operand.vmem [shape: bf16[128,128], index: 3, kind: input, shape index: {}]
  %s4 = inlined_call_operand.vmem [shape: f32[1,128], index: 4, kind: input, shape index: {}]
  %s5 = inlined_call_operand.vmem [shape: bf16[128,128], index: 5, kind: input, shape index: {}]
  %s6 = inlined_call_operand.vmem [shape: f32[1,128], index: 6, kind: input, shape index: {}]
  %s7 = inlined_call_operand.vmem [shape: bf16[128,128], index: 7, kind: input, shape index: {}]
  %s8 = inlined_call_operand.vmem [shape: f32[1,128], index: 8, kind: input, shape index: {}]
  %s9 = inlined_call_operand.vmem [shape: bf16[128,128], index: 9, kind: input, shape index: {}]
  %s10 = inlined_call_operand.vmem [shape: f32[1,128], index: 10, kind: input, shape index: {}]
  %s11 = inlined_call_operand.vmem [shape: bf16[256,128], index: 11, kind: input, shape index: {}]
  %s12 = inlined_call_operand.vmem [shape: f32[1,128], index: 12, kind: input, shape index: {}]
  %s13 = inlined_call_operand.hbm [shape: f32[8,128], index: 13, kind: output, shape index: {0}]
  %s14 = inlined_call_operand.hbm [shape: f32[8,128], index: 14, kind: output, shape index: {1}]
  %s15 = inlined_call_operand.hbm [shape: f32[1,1], index: 15, kind: output, shape index: {2}]
  %16 = xla_tuple %s13, %s14, %s15
  %s17 = sld [smem:[#allocation0]]
  $region78: #{_lambda_.1} parent=0
    _
  %s19 = ssub.s32 1, %s17
  %s20 = scalar_select 0, %s19, %s17
  $region1: #{_lambda_.1} parent=0
    #allocation2 [shape = 'u8[4096]{0}', space=vmem, size = 0x1000, scoped, tag = 'output window, operand 0, single buffered']
    #allocation3 [shape = 's32[1]{0}', space=sflag, size = 0x4, scoped, tag = 'scoped memory for _lambda_.1']
    #allocation4 [shape = 's32[1]{0}', space=sflag, size = 0x4, scoped, tag = 'scoped memory for _lambda_.1']
    #allocation5 [shape = 'u8[4096]{0}', space=vmem, size = 0x1000, scoped, tag = 'output window, operand 1, single buffered']
    #allocation6 [shape = 's32[1]{0}', space=sflag, size = 0x4, scoped, tag = 'scoped memory for _lambda_.1']
    #allocation7 [shape = 'u8[512]{0}', space=smem, size = 0x200, scoped, tag = 'output window, operand 2, single buffered']
    %21 = vsyncpa [#allocation3], 0
    %22 = vsyncpa [#allocation6], 0
    %23 = vsyncpa [#allocation4], 0
    // Predicated region
    $region2: #{_lambda_.1} parent=1 // pred_check
      _
    $region3: #{_lambda_.1} parent=1 // pred_check_branch
      %25 = sbr.rel (0) target = $region5
    $region4: #{_lambda_.1} parent=1 // pred_region
      _
    $region5: #{_lambda_.1} parent=1 // pred_fallthru
      _
    // Predicated region
    $region6: #{_lambda_.1} parent=1 // pred_check
      _
    $region7: #{_lambda_.1} parent=1 // pred_check_branch
      %27 = sbr.rel (0) target = $region9
    $region8: #{_lambda_.1} parent=1 // pred_region
      _
    $region9: #{_lambda_.1} parent=1 // pred_fallthru
      _
    // Predicated region
    $region10: #{_lambda_.1} parent=1 // pred_check
      _
    $region11: #{_lambda_.1} parent=1 // pred_check_branch
      %29 = sbr.rel (0) target = $region13
    $region12: #{_lambda_.1} parent=1 // pred_region
      _
    $region13: #{_lambda_.1} parent=1 // pred_fallthru
      _
    // Predicated region
    $region14: #{_lambda_.1} parent=1 // pred_check
      _
    $region15: #{_lambda_.1} parent=1 // pred_check_branch
      %31 = sbr.rel (0) target = $region17
    $region16: #{_lambda_.1} parent=1 // pred_region
      _
    $region17: #{_lambda_.1} parent=1 // pred_fallthru
      _
    // Predicated region
    $region18: #{_lambda_.1} parent=1 // pred_check
      _
    $region19: #{_lambda_.1} parent=1 // pred_check_branch
      %33 = sbr.rel (0) target = $region21
    $region20: #{_lambda_.1} parent=1 // pred_region
      _
    $region21: #{_lambda_.1} parent=1 // pred_fallthru
      _
    // Predicated region
    $region22: #{_lambda_.1} parent=1 // pred_check
      _
    $region23: #{_lambda_.1} parent=1 // pred_check_branch
      %35 = sbr.rel (0) target = $region25
    $region24: #{_lambda_.1} parent=1 // pred_region
      _
    $region25: #{_lambda_.1} parent=1 // pred_fallthru
      _
    // Predicated region
    $region26: #{_lambda_.1} parent=1 // pred_check
      _
    $region27: #{_lambda_.1} parent=1 // pred_check_branch
      %37 = sbr.rel (0) target = $region29
    $region28: #{_lambda_.1} parent=1 // pred_region
      _
    $region29: #{_lambda_.1} parent=1 // pred_fallthru
      _
    // Predicated region
    $region30: #{_lambda_.1} parent=1 // pred_check
      _
    $region31: #{_lambda_.1} parent=1 // pred_check_branch
      %39 = sbr.rel (0) target = $region33
    $region32: #{_lambda_.1} parent=1 // pred_region
      _
    $region33: #{_lambda_.1} parent=1 // pred_fallthru
      _
    // Predicated region
    $region34: #{_lambda_.1} parent=1 // pred_check
      _
    $region35: #{_lambda_.1} parent=1 // pred_check_branch
      %41 = sbr.rel (0) target = $region37
    $region36: #{_lambda_.1} parent=1 // pred_region
      _
    $region37: #{_lambda_.1} parent=1 // pred_fallthru
      _
    // Predicated region
    $region38: #{_lambda_.1} parent=1 // pred_check
      _
    $region39: #{_lambda_.1} parent=1 // pred_check_branch
      %43 = sbr.rel (0) target = $region41
    $region40: #{_lambda_.1} parent=1 // pred_region
      _
    $region41: #{_lambda_.1} parent=1 // pred_fallthru
      _
    // Predicated region
    $region42: #{_lambda_.1} parent=1 // pred_check
      _
    $region43: #{_lambda_.1} parent=1 // pred_check_branch
      %45 = sbr.rel (0) target = $region45
    $region44: #{_lambda_.1} parent=1 // pred_region
      _
    $region45: #{_lambda_.1} parent=1 // pred_fallthru
      _
    // Predicated region
    $region46: #{_lambda_.1} parent=1 // pred_check
      _
    $region47: #{_lambda_.1} parent=1 // pred_check_branch
      %47 = sbr.rel (0) target = $region49
    $region48: #{_lambda_.1} parent=1 // pred_region
      _
    $region49: #{_lambda_.1} parent=1 // pred_fallthru
      _
    // Predicated region
    $region50: #{_lambda_.1} parent=1 // pred_check
      _
    $region51: #{_lambda_.1} parent=1 // pred_check_branch
      %49 = sbr.rel (0) target = $region53
    $region52: #{_lambda_.1} parent=1 // pred_region
      _
    $region53: #{_lambda_.1} parent=1 // pred_fallthru
      _
    %v51 = vld [vmem:[%s0] sm:$0xff]
    %v52 = vld [vmem:[%s0 + $0x8] sm:$0xff]
    %v53 = vpack.c.bf16 %v52, %v51
    %v54 = vld [vmem:[%s1] sm:$0xf]
    %v55 = vld [vmem:[%s1 + $0x4] sm:$0xf]
    %v56 = vld [vmem:[%s1 + $0x8] sm:$0xf]
    %v57 = vld [vmem:[%s1 + $0xc] sm:$0xf]
    %v58 = vld [vmem:[%s1 + $0x10] sm:$0xf]
    %v59 = vld [vmem:[%s1 + $0x14] sm:$0xf]
    %v60 = vld [vmem:[%s1 + $0x18] sm:$0xf]
    %v61 = vld [vmem:[%s1 + $0x1c] sm:$0xf]
    %v62 = vld [vmem:[%s1 + $0x20] sm:$0xf]
    %v63 = vld [vmem:[%s1 + $0x24] sm:$0xf]
    %v64 = vld [vmem:[%s1 + $0x28] sm:$0xf]
    %v65 = vld [vmem:[%s1 + $0x2c] sm:$0xf]
    %v66 = vld [vmem:[%s1 + $0x30] sm:$0xf]
    %v67 = vld [vmem:[%s1 + $0x34] sm:$0xf]
    %v68 = vld [vmem:[%s1 + $0x38] sm:$0xf]
    %v69 = vld [vmem:[%s1 + $0x3c] sm:$0xf]
    %v70 = vld [vmem:[%s2] sm:$0x1]
    %v72 = vlaneseq
    %v73 = vshrl.u32 %v72, 7
    %v74 = vsub.s32 0, %v73
    %v75 = vrot.slane %v70, %v74
    %v93 = vunpack.c.l.b16 %v54
    %v94 = vunpack.c.l.b16 %v55
    %v95 = vunpack.c.l.b16 %v56
    %v96 = vunpack.c.l.b16 %v57
    %v97 = vunpack.c.l.b16 %v58
    %v98 = vunpack.c.l.b16 %v59
    %v99 = vunpack.c.l.b16 %v60
    %v100 = vunpack.c.l.b16 %v61
    %v101 = vunpack.c.l.b16 %v62
    %v102 = vunpack.c.l.b16 %v63
    %v103 = vunpack.c.l.b16 %v64
    %v104 = vunpack.c.l.b16 %v65
    %v105 = vunpack.c.l.b16 %v66
    %v106 = vunpack.c.l.b16 %v67
    %v107 = vunpack.c.l.b16 %v68
    %v108 = vunpack.c.l.b16 %v69
    %v109 = vpack.c.b16 %v94, %v93
    %v110 = vpack.c.b16 %v96, %v95
    %v111 = vpack.c.b16 %v98, %v97
    %v112 = vpack.c.b16 %v100, %v99
    %v113 = vpack.c.b16 %v102, %v101
    %v114 = vpack.c.b16 %v104, %v103
    %v115 = vpack.c.b16 %v106, %v105
    %v116 = vpack.c.b16 %v108, %v107
    %125 = vmatprep.subr.bf16.mxu0 0
    %126 = vmatpush1.bf16.msra.mxu0 %v109
    %127 = vmatprep.subr.bf16.mxu0 0
    %128 = vmatpush1.bf16.msra.mxu0 %v110
    %129 = vmatprep.subr.bf16.mxu0 0
    %130 = vmatpush1.bf16.msra.mxu0 %v111
    %131 = vmatprep.subr.bf16.mxu0 0
    %132 = vmatpush1.bf16.msra.mxu0 %v112
    %133 = vmatprep.subr.bf16.mxu0 0
    %134 = vmatpush1.bf16.msra.mxu0 %v113
    %135 = vmatprep.subr.bf16.mxu0 0
    %136 = vmatpush1.bf16.msra.mxu0 %v114
    %137 = vmatprep.subr.bf16.mxu0 0
    %138 = vmatpush1.bf16.msra.mxu0 %v115
    %139 = vmatprep.subr.bf16.mxu0 0
    %140 = vmatpush1.bf16.msra.mxu0 %v116
    %141 = vmatprep.subr.bf16.mxu0 0
    %142 = vmatpush1.bf16.msra.mxu0 0
    %143 = vmatprep.subr.bf16.mxu0 0
    %144 = vmatpush1.bf16.msra.mxu0 0
    %145 = vmatprep.subr.bf16.mxu0 0
    %146 = vmatpush1.bf16.msra.mxu0 0
    %147 = vmatprep.subr.bf16.mxu0 0
    %148 = vmatpush1.bf16.msra.mxu0 0
    %149 = vmatprep.subr.bf16.mxu0 0
    %150 = vmatpush1.bf16.msra.mxu0 0
    %151 = vmatprep.subr.bf16.mxu0 0
    %152 = vmatpush1.bf16.msra.mxu0 0
    %153 = vmatprep.subr.bf16.mxu0 0
    %154 = vmatpush1.bf16.msra.mxu0 0
    %155 = vmatprep.subr.bf16.mxu0 0
    %156 = vmatpush1.bf16.msra.mxu0 0
    %157 = vmatprep.mubr.bf16.mxu0 0
    %158 = vmatmul.mubr.bf16.gmra.mrb[0].mxu0 %v53
    %v159 = vpop.f32.mrb[0].mxu0
    %v160 = vadd.f32 %v75, %v159
    %v161 = vpop.f32.mrb[0].mxu0
    %v162 = vpop.f32.mrb[0].mxu0
    %v163 = vadd.f32 %v75, %v162
    %v164 = vpop.f32.mrb[0].mxu0
    %165 = vdwg.mxu0
    %v166 = vtanh.pop %v160
    %v167 = vtanh.pop %v163
    %v168 = vpack.c.bf16 %v166, %v166
    %v169 = vpack.c.bf16 %v167, %v167
    %v170 = vld [vmem:[%s3] sm:$0xf]
    %v171 = vld [vmem:[%s3 + $0x4] sm:$0xf]
    %v172 = vld [vmem:[%s3 + $0x8] sm:$0xf]
    %v173 = vld [vmem:[%s3 + $0xc] sm:$0xf]
    %v174 = vld [vmem:[%s3 + $0x10] sm:$0xf]
    %v175 = vld [vmem:[%s3 + $0x14] sm:$0xf]
    %v176 = vld [vmem:[%s3 + $0x18] sm:$0xf]
    %v177 = vld [vmem:[%s3 + $0x1c] sm:$0xf]
    %v178 = vld [vmem:[%s3 + $0x20] sm:$0xf]
    %v179 = vld [vmem:[%s3 + $0x24] sm:$0xf]
    %v180 = vld [vmem:[%s3 + $0x28] sm:$0xf]
    %v181 = vld [vmem:[%s3 + $0x2c] sm:$0xf]
    %v182 = vld [vmem:[%s3 + $0x30] sm:$0xf]
    %v183 = vld [vmem:[%s3 + $0x34] sm:$0xf]
    %v184 = vld [vmem:[%s3 + $0x38] sm:$0xf]
    %v185 = vld [vmem:[%s3 + $0x3c] sm:$0xf]
    %v186 = vld [vmem:[%s4] sm:$0x1]
    %v188 = vlaneseq
    %v189 = vshrl.u32 %v188, 7
    %v190 = vsub.s32 0, %v189
    %v191 = vrot.slane %v186, %v190
    %v209 = vunpack.c.l.b16 %v170
    %v210 = vunpack.c.l.b16 %v171
    %v211 = vunpack.c.l.b16 %v172
    %v212 = vunpack.c.l.b16 %v173
    %v213 = vunpack.c.l.b16 %v174
    %v214 = vunpack.c.l.b16 %v175
    %v215 = vunpack.c.l.b16 %v176
    %v216 = vunpack.c.l.b16 %v177
    %v217 = vunpack.c.l.b16 %v178
    %v218 = vunpack.c.l.b16 %v179
    %v219 = vunpack.c.l.b16 %v180
    %v220 = vunpack.c.l.b16 %v181
    %v221 = vunpack.c.l.b16 %v182
    %v222 = vunpack.c.l.b16 %v183
    %v223 = vunpack.c.l.b16 %v184
    %v224 = vunpack.c.l.b16 %v185
    %v225 = vpack.c.b16 %v210, %v209
    %v226 = vpack.c.b16 %v212, %v211
    %v227 = vpack.c.b16 %v214, %v213
    %v228 = vpack.c.b16 %v216, %v215
    %v229 = vpack.c.b16 %v218, %v217
    %v230 = vpack.c.b16 %v220, %v219
    %v231 = vpack.c.b16 %v222, %v221
    %v232 = vpack.c.b16 %v224, %v223
    %241 = vmatprep.subr.bf16.mxu0 0
    %242 = vmatpush1.bf16.msra.mxu0 %v225
    %243 = vmatprep.subr.bf16.mxu0 0
    %244 = vmatpush1.bf16.msra.mxu0 %v226
    %245 = vmatprep.subr.bf16.mxu0 0
    %246 = vmatpush1.bf16.msra.mxu0 %v227
    %247 = vmatprep.subr.bf16.mxu0 0
    %248 = vmatpush1.bf16.msra.mxu0 %v228
    %249 = vmatprep.subr.bf16.mxu0 0
    %250 = vmatpush1.bf16.msra.mxu0 %v229
    %251 = vmatprep.subr.bf16.mxu0 0
    %252 = vmatpush1.bf16.msra.mxu0 %v230
    %253 = vmatprep.subr.bf16.mxu0 0
    %254 = vmatpush1.bf16.msra.mxu0 %v231
    %255 = vmatprep.subr.bf16.mxu0 0
    %256 = vmatpush1.bf16.msra.mxu0 %v232
    %257 = vmatprep.subr.bf16.mxu0 0
    %258 = vmatpush1.bf16.msra.mxu0 0
    %259 = vmatprep.subr.bf16.mxu0 0
    %260 = vmatpush1.bf16.msra.mxu0 0
    %261 = vmatprep.subr.bf16.mxu0 0
    %262 = vmatpush1.bf16.msra.mxu0 0
    %263 = vmatprep.subr.bf16.mxu0 0
    %264 = vmatpush1.bf16.msra.mxu0 0
    %265 = vmatprep.subr.bf16.mxu0 0
    %266 = vmatpush1.bf16.msra.mxu0 0
    %267 = vmatprep.subr.bf16.mxu0 0
    %268 = vmatpush1.bf16.msra.mxu0 0
    %269 = vmatprep.subr.bf16.mxu0 0
    %270 = vmatpush1.bf16.msra.mxu0 0
    %271 = vmatprep.subr.bf16.mxu0 0
    %272 = vmatpush1.bf16.msra.mxu0 0
    %273 = vmatprep.mubr.bf16.mxu0 0
    %274 = vmatmul.mubr.bf16.gmra.mrb[0].mxu0 %v169
    %v275 = vpop.f32.mrb[0].mxu0
    %v276 = vadd.f32 %v191, %v275
    %v277 = vpop.f32.mrb[0].mxu0
    %v278 = vpop.f32.mrb[0].mxu0
    %v279 = vpop.f32.mrb[0].mxu0
    %280 = vdwg.mxu0
    %v281 = vld [vmem:[%s5] sm:$0xf]
    %v282 = vld [vmem:[%s5 + $0x4] sm:$0xf]
    %v283 = vld [vmem:[%s5 + $0x8] sm:$0xf]
    %v284 = vld [vmem:[%s5 + $0xc] sm:$0xf]
    %v285 = vld [vmem:[%s5 + $0x10] sm:$0xf]
    %v286 = vld [vmem:[%s5 + $0x14] sm:$0xf]
    %v287 = vld [vmem:[%s5 + $0x18] sm:$0xf]
    %v288 = vld [vmem:[%s5 + $0x1c] sm:$0xf]
    %v289 = vld [vmem:[%s5 + $0x20] sm:$0xf]
    %v290 = vld [vmem:[%s5 + $0x24] sm:$0xf]
    %v291 = vld [vmem:[%s5 + $0x28] sm:$0xf]
    %v292 = vld [vmem:[%s5 + $0x2c] sm:$0xf]
    %v293 = vld [vmem:[%s5 + $0x30] sm:$0xf]
    %v294 = vld [vmem:[%s5 + $0x34] sm:$0xf]
    %v295 = vld [vmem:[%s5 + $0x38] sm:$0xf]
    %v296 = vld [vmem:[%s5 + $0x3c] sm:$0xf]
    %v297 = vld [vmem:[%s6] sm:$0x1]
    %v299 = vlaneseq
    %v300 = vshrl.u32 %v299, 7
    %v301 = vsub.s32 0, %v300
    %v302 = vrot.slane %v297, %v301
    %v320 = vunpack.c.l.b16 %v281
    %v321 = vunpack.c.l.b16 %v282
    %v322 = vunpack.c.l.b16 %v283
    %v323 = vunpack.c.l.b16 %v284
    %v324 = vunpack.c.l.b16 %v285
    %v325 = vunpack.c.l.b16 %v286
    %v326 = vunpack.c.l.b16 %v287
    %v327 = vunpack.c.l.b16 %v288
    %v328 = vunpack.c.l.b16 %v289
    %v329 = vunpack.c.l.b16 %v290
    %v330 = vunpack.c.l.b16 %v291
    %v331 = vunpack.c.l.b16 %v292
    %v332 = vunpack.c.l.b16 %v293
    %v333 = vunpack.c.l.b16 %v294
    %v334 = vunpack.c.l.b16 %v295
    %v335 = vunpack.c.l.b16 %v296
    %v336 = vpack.c.b16 %v321, %v320
    %v337 = vpack.c.b16 %v323, %v322
    %v338 = vpack.c.b16 %v325, %v324
    %v339 = vpack.c.b16 %v327, %v326
    %v340 = vpack.c.b16 %v329, %v328
    %v341 = vpack.c.b16 %v331, %v330
    %v342 = vpack.c.b16 %v333, %v332
    %v343 = vpack.c.b16 %v335, %v334
    %352 = vmatprep.subr.bf16.mxu0 0
    %353 = vmatpush1.bf16.msra.mxu0 %v336
    %354 = vmatprep.subr.bf16.mxu0 0
    %355 = vmatpush1.bf16.msra.mxu0 %v337
    %356 = vmatprep.subr.bf16.mxu0 0
    %357 = vmatpush1.bf16.msra.mxu0 %v338
    %358 = vmatprep.subr.bf16.mxu0 0
    %359 = vmatpush1.bf16.msra.mxu0 %v339
    %360 = vmatprep.subr.bf16.mxu0 0
    %361 = vmatpush1.bf16.msra.mxu0 %v340
    %362 = vmatprep.subr.bf16.mxu0 0
    %363 = vmatpush1.bf16.msra.mxu0 %v341
    %364 = vmatprep.subr.bf16.mxu0 0
    %365 = vmatpush1.bf16.msra.mxu0 %v342
    %366 = vmatprep.subr.bf16.mxu0 0
    %367 = vmatpush1.bf16.msra.mxu0 %v343
    %368 = vmatprep.subr.bf16.mxu0 0
    %369 = vmatpush1.bf16.msra.mxu0 0
    %370 = vmatprep.subr.bf16.mxu0 0
    %371 = vmatpush1.bf16.msra.mxu0 0
    %372 = vmatprep.subr.bf16.mxu0 0
    %373 = vmatpush1.bf16.msra.mxu0 0
    %374 = vmatprep.subr.bf16.mxu0 0
    %375 = vmatpush1.bf16.msra.mxu0 0
    %376 = vmatprep.subr.bf16.mxu0 0
    %377 = vmatpush1.bf16.msra.mxu0 0
    %378 = vmatprep.subr.bf16.mxu0 0
    %379 = vmatpush1.bf16.msra.mxu0 0
    %380 = vmatprep.subr.bf16.mxu0 0
    %381 = vmatpush1.bf16.msra.mxu0 0
    %382 = vmatprep.subr.bf16.mxu0 0
    %383 = vmatpush1.bf16.msra.mxu0 0
    %384 = vmatprep.mubr.bf16.mxu0 0
    %385 = vmatmul.mubr.bf16.gmra.mrb[0].mxu0 %v168
    %v386 = vpop.f32.mrb[0].mxu0
    %v387 = vadd.f32 %v302, %v386
    %v388 = vpop.f32.mrb[0].mxu0
    %v389 = vpop.f32.mrb[0].mxu0
    %v390 = vpop.f32.mrb[0].mxu0
    %391 = vdwg.mxu0
    %v392 = vld [vmem:[%s7] sm:$0xf]
    %v393 = vld [vmem:[%s7 + $0x4] sm:$0xf]
    %v394 = vld [vmem:[%s7 + $0x8] sm:$0xf]
    %v395 = vld [vmem:[%s7 + $0xc] sm:$0xf]
    %v396 = vld [vmem:[%s7 + $0x10] sm:$0xf]
    %v397 = vld [vmem:[%s7 + $0x14] sm:$0xf]
    %v398 = vld [vmem:[%s7 + $0x18] sm:$0xf]
    %v399 = vld [vmem:[%s7 + $0x1c] sm:$0xf]
    %v400 = vld [vmem:[%s7 + $0x20] sm:$0xf]
    %v401 = vld [vmem:[%s7 + $0x24] sm:$0xf]
    %v402 = vld [vmem:[%s7 + $0x28] sm:$0xf]
    %v403 = vld [vmem:[%s7 + $0x2c] sm:$0xf]
    %v404 = vld [vmem:[%s7 + $0x30] sm:$0xf]
    %v405 = vld [vmem:[%s7 + $0x34] sm:$0xf]
    %v406 = vld [vmem:[%s7 + $0x38] sm:$0xf]
    %v407 = vld [vmem:[%s7 + $0x3c] sm:$0xf]
    %v408 = vld [vmem:[%s8] sm:$0x1]
    %v410 = vlaneseq
    %v411 = vshrl.u32 %v410, 7
    %v412 = vsub.s32 0, %v411
    %v413 = vrot.slane %v408, %v412
    %v431 = vunpack.c.l.b16 %v392
    %v432 = vunpack.c.l.b16 %v393
    %v433 = vunpack.c.l.b16 %v394
    %v434 = vunpack.c.l.b16 %v395
    %v435 = vunpack.c.l.b16 %v396
    %v436 = vunpack.c.l.b16 %v397
    %v437 = vunpack.c.l.b16 %v398
    %v438 = vunpack.c.l.b16 %v399
    %v439 = vunpack.c.l.b16 %v400
    %v440 = vunpack.c.l.b16 %v401
    %v441 = vunpack.c.l.b16 %v402
    %v442 = vunpack.c.l.b16 %v403
    %v443 = vunpack.c.l.b16 %v404
    %v444 = vunpack.c.l.b16 %v405
    %v445 = vunpack.c.l.b16 %v406
    %v446 = vunpack.c.l.b16 %v407
    %v447 = vpack.c.b16 %v432, %v431
    %v448 = vpack.c.b16 %v434, %v433
    %v449 = vpack.c.b16 %v436, %v435
    %v450 = vpack.c.b16 %v438, %v437
    %v451 = vpack.c.b16 %v440, %v439
    %v452 = vpack.c.b16 %v442, %v441
    %v453 = vpack.c.b16 %v444, %v443
    %v454 = vpack.c.b16 %v446, %v445
    %463 = vmatprep.subr.bf16.mxu0 0
    %464 = vmatpush1.bf16.msra.mxu0 %v447
    %465 = vmatprep.subr.bf16.mxu0 0
    %466 = vmatpush1.bf16.msra.mxu0 %v448
    %467 = vmatprep.subr.bf16.mxu0 0
    %468 = vmatpush1.bf16.msra.mxu0 %v449
    %469 = vmatprep.subr.bf16.mxu0 0
    %470 = vmatpush1.bf16.msra.mxu0 %v450
    %471 = vmatprep.subr.bf16.mxu0 0
    %472 = vmatpush1.bf16.msra.mxu0 %v451
    %473 = vmatprep.subr.bf16.mxu0 0
    %474 = vmatpush1.bf16.msra.mxu0 %v452
    %475 = vmatprep.subr.bf16.mxu0 0
    %476 = vmatpush1.bf16.msra.mxu0 %v453
    %477 = vmatprep.subr.bf16.mxu0 0
    %478 = vmatpush1.bf16.msra.mxu0 %v454
    %479 = vmatprep.subr.bf16.mxu0 0
    %480 = vmatpush1.bf16.msra.mxu0 0
    %481 = vmatprep.subr.bf16.mxu0 0
    %482 = vmatpush1.bf16.msra.mxu0 0
    %483 = vmatprep.subr.bf16.mxu0 0
    %484 = vmatpush1.bf16.msra.mxu0 0
    %485 = vmatprep.subr.bf16.mxu0 0
    %486 = vmatpush1.bf16.msra.mxu0 0
    %487 = vmatprep.subr.bf16.mxu0 0
    %488 = vmatpush1.bf16.msra.mxu0 0
    %489 = vmatprep.subr.bf16.mxu0 0
    %490 = vmatpush1.bf16.msra.mxu0 0
    %491 = vmatprep.subr.bf16.mxu0 0
    %492 = vmatpush1.bf16.msra.mxu0 0
    %493 = vmatprep.subr.bf16.mxu0 0
    %494 = vmatpush1.bf16.msra.mxu0 0
    %495 = vmatprep.mubr.bf16.mxu0 0
    %496 = vmatmul.mubr.bf16.gmra.mrb[0].mxu0 %v168
    %v497 = vpop.f32.mrb[0].mxu0
    %v498 = vadd.f32 %v413, %v497
    %v499 = vpop.f32.mrb[0].mxu0
    %v500 = vpop.f32.mrb[0].mxu0
    %v501 = vpop.f32.mrb[0].mxu0
    %502 = vdwg.mxu0
    %v503 = vpack.c.bf16 %v276, %v276
    %v504 = vpack.c.bf16 %v387, %v387
    %vm505 = vcmask 261120
    %v507 = vsel %vm505, %v503, 0
    %v510 = vsel %vm505, %v504, 0
    %512 = vmatprep.subr.bf16.mxu0 0
    %513 = vmatpush1.bf16.xpose.msra.mxu0 %v510
    %514 = vmatprep.subr.bf16.mxu0 0
    %515 = vmatpush1.bf16.xpose.msra.mxu0 0
    %516 = vmatprep.subr.bf16.mxu0 0
    %517 = vmatpush1.bf16.xpose.msra.mxu0 0
    %518 = vmatprep.subr.bf16.mxu0 0
    %519 = vmatpush1.bf16.xpose.msra.mxu0 0
    %520 = vmatprep.subr.bf16.mxu0 0
    %521 = vmatpush1.bf16.xpose.msra.mxu0 0
    %522 = vmatprep.subr.bf16.mxu0 0
    %523 = vmatpush1.bf16.xpose.msra.mxu0 0
    %524 = vmatprep.subr.bf16.mxu0 0
    %525 = vmatpush1.bf16.xpose.msra.mxu0 0
    %526 = vmatprep.subr.bf16.mxu0 0
    %527 = vmatpush1.bf16.xpose.msra.mxu0 0
    %528 = vmatprep.subr.bf16.mxu0 0
    %529 = vmatpush1.bf16.xpose.msra.mxu0 0
    %530 = vmatprep.subr.bf16.mxu0 0
    %531 = vmatpush1.bf16.xpose.msra.mxu0 0
    %532 = vmatprep.subr.bf16.mxu0 0
    %533 = vmatpush1.bf16.xpose.msra.mxu0 0
    %534 = vmatprep.subr.bf16.mxu0 0
    %535 = vmatpush1.bf16.xpose.msra.mxu0 0
    %536 = vmatprep.subr.bf16.mxu0 0
    %537 = vmatpush1.bf16.xpose.msra.mxu0 0
    %538 = vmatprep.subr.bf16.mxu0 0
    %539 = vmatpush1.bf16.xpose.msra.mxu0 0
    %540 = vmatprep.subr.bf16.mxu0 0
    %541 = vmatpush1.bf16.xpose.msra.mxu0 0
    %542 = vmatprep.subr.bf16.mxu0 0
    %543 = vmatpush1.bf16.xpose.msra.mxu0 0
    %544 = vmatprep.mubr.bf16.mxu0 0
    %545 = vmatmul.mubr.bf16.gmra.mrb[0].mxu0 %v507
    %v546 = vpop.f32.mrb[0].mxu0
    %v547 = vadd.f32 0.0, %v546
    %v548 = vpop.f32.mrb[0].mxu0
    %v549 = vpop.f32.mrb[0].mxu0
    %v550 = vpop.f32.mrb[0].mxu0
    %551 = vdwg.mxu0
    %553 = vrot.lane.b32.xlu0 %v503, 96
    %v554 = vpop.permute.xlu0 %553
    %556 = vrot.lane.b32.xlu0 %v504, 96
    %v557 = vpop.permute.xlu0 %556
    %v559 = vsel %vm505, %v554, 0
    %v562 = vsel %vm505, %v557, 0
    %564 = vmatprep.subr.bf16.mxu0 0
    %565 = vmatpush1.bf16.xpose.msra.mxu0 %v562
    %566 = vmatprep.subr.bf16.mxu0 0
    %567 = vmatpush1.bf16.xpose.msra.mxu0 0
    %568 = vmatprep.subr.bf16.mxu0 0
    %569 = vmatpush1.bf16.xpose.msra.mxu0 0
    %570 = vmatprep.subr.bf16.mxu0 0
    %571 = vmatpush1.bf16.xpose.msra.mxu0 0
    %572 = vmatprep.subr.bf16.mxu0 0
    %573 = vmatpush1.bf16.xpose.msra.mxu0 0
    %574 = vmatprep.subr.bf16.mxu0 0
    %575 = vmatpush1.bf16.xpose.msra.mxu0 0
    %576 = vmatprep.subr.bf16.mxu0 0
    %577 = vmatpush1.bf16.xpose.msra.mxu0 0
    %578 = vmatprep.subr.bf16.mxu0 0
    %579 = vmatpush1.bf16.xpose.msra.mxu0 0
    %580 = vmatprep.subr.bf16.mxu0 0
    %581 = vmatpush1.bf16.xpose.msra.mxu0 0
    %582 = vmatprep.subr.bf16.mxu0 0
    %583 = vmatpush1.bf16.xpose.msra.mxu0 0
    %584 = vmatprep.subr.bf16.mxu0 0
    %585 = vmatpush1.bf16.xpose.msra.mxu0 0
    %586 = vmatprep.subr.bf16.mxu0 0
    %587 = vmatpush1.bf16.xpose.msra.mxu0 0
    %588 = vmatprep.subr.bf16.mxu0 0
    %589 = vmatpush1.bf16.xpose.msra.mxu0 0
    %590 = vmatprep.subr.bf16.mxu0 0
    %591 = vmatpush1.bf16.xpose.msra.mxu0 0
    %592 = vmatprep.subr.bf16.mxu0 0
    %593 = vmatpush1.bf16.xpose.msra.mxu0 0
    %594 = vmatprep.subr.bf16.mxu0 0
    %595 = vmatpush1.bf16.xpose.msra.mxu0 0
    %596 = vmatprep.mubr.bf16.mxu0 0
    %597 = vmatmul.mubr.bf16.gmra.mrb[0].mxu0 %v559
    %v598 = vpop.f32.mrb[0].mxu0
    %v599 = vadd.f32 0.0, %v598
    %v600 = vpop.f32.mrb[0].mxu0
    %v601 = vpop.f32.mrb[0].mxu0
    %v602 = vpop.f32.mrb[0].mxu0
    %603 = vdwg.mxu0
    %604 = vrot.lane.b32.xlu0 %v503, 64
    %v605 = vpop.permute.xlu0 %604
    %606 = vrot.lane.b32.xlu0 %v504, 64
    %v607 = vpop.permute.xlu0 %606
    %v609 = vsel %vm505, %v605, 0
    %v612 = vsel %vm505, %v607, 0
    %614 = vmatprep.subr.bf16.mxu0 0
    %615 = vmatpush1.bf16.xpose.msra.mxu0 %v612
    %616 = vmatprep.subr.bf16.mxu0 0
    %617 = vmatpush1.bf16.xpose.msra.mxu0 0
    %618 = vmatprep.subr.bf16.mxu0 0
    %619 = vmatpush1.bf16.xpose.msra.mxu0 0
    %620 = vmatprep.subr.bf16.mxu0 0
    %621 = vmatpush1.bf16.xpose.msra.mxu0 0
    %622 = vmatprep.subr.bf16.mxu0 0
    %623 = vmatpush1.bf16.xpose.msra.mxu0 0
    %624 = vmatprep.subr.bf16.mxu0 0
    %625 = vmatpush1.bf16.xpose.msra.mxu0 0
    %626 = vmatprep.subr.bf16.mxu0 0
    %627 = vmatpush1.bf16.xpose.msra.mxu0 0
    %628 = vmatprep.subr.bf16.mxu0 0
    %629 = vmatpush1.bf16.xpose.msra.mxu0 0
    %630 = vmatprep.subr.bf16.mxu0 0
    %631 = vmatpush1.bf16.xpose.msra.mxu0 0
    %632 = vmatprep.subr.bf16.mxu0 0
    %633 = vmatpush1.bf16.xpose.msra.mxu0 0
    %634 = vmatprep.subr.bf16.mxu0 0
    %635 = vmatpush1.bf16.xpose.msra.mxu0 0
    %636 = vmatprep.subr.bf16.mxu0 0
    %637 = vmatpush1.bf16.xpose.msra.mxu0 0
    %638 = vmatprep.subr.bf16.mxu0 0
    %639 = vmatpush1.bf16.xpose.msra.mxu0 0
    %640 = vmatprep.subr.bf16.mxu0 0
    %641 = vmatpush1.bf16.xpose.msra.mxu0 0
    %642 = vmatprep.subr.bf16.mxu0 0
    %643 = vmatpush1.bf16.xpose.msra.mxu0 0
    %644 = vmatprep.subr.bf16.mxu0 0
    %645 = vmatpush1.bf16.xpose.msra.mxu0 0
    %646 = vmatprep.mubr.bf16.mxu0 0
    %647 = vmatmul.mubr.bf16.gmra.mrb[0].mxu0 %v609
    %v648 = vpop.f32.mrb[0].mxu0
    %v649 = vadd.f32 0.0, %v648
    %v650 = vpop.f32.mrb[0].mxu0
    %v651 = vpop.f32.mrb[0].mxu0
    %v652 = vpop.f32.mrb[0].mxu0
    %653 = vdwg.mxu0
    %654 = vrot.lane.b32.xlu0 %v503, 32
    %v655 = vpop.permute.xlu0 %654
    %656 = vrot.lane.b32.xlu0 %v504, 32
    %v657 = vpop.permute.xlu0 %656
    %v659 = vsel %vm505, %v655, 0
    %v662 = vsel %vm505, %v657, 0
    %664 = vmatprep.subr.bf16.mxu0 0
    %665 = vmatpush1.bf16.xpose.msra.mxu0 %v662
    %666 = vmatprep.subr.bf16.mxu0 0
    %667 = vmatpush1.bf16.xpose.msra.mxu0 0
    %668 = vmatprep.subr.bf16.mxu0 0
    %669 = vmatpush1.bf16.xpose.msra.mxu0 0
    %670 = vmatprep.subr.bf16.mxu0 0
    %671 = vmatpush1.bf16.xpose.msra.mxu0 0
    %672 = vmatprep.subr.bf16.mxu0 0
    %673 = vmatpush1.bf16.xpose.msra.mxu0 0
    %674 = vmatprep.subr.bf16.mxu0 0
    %675 = vmatpush1.bf16.xpose.msra.mxu0 0
    %676 = vmatprep.subr.bf16.mxu0 0
    %677 = vmatpush1.bf16.xpose.msra.mxu0 0
    %678 = vmatprep.subr.bf16.mxu0 0
    %679 = vmatpush1.bf16.xpose.msra.mxu0 0
    %680 = vmatprep.subr.bf16.mxu0 0
    %681 = vmatpush1.bf16.xpose.msra.mxu0 0
    %682 = vmatprep.subr.bf16.mxu0 0
    %683 = vmatpush1.bf16.xpose.msra.mxu0 0
    %684 = vmatprep.subr.bf16.mxu0 0
    %685 = vmatpush1.bf16.xpose.msra.mxu0 0
    %686 = vmatprep.subr.bf16.mxu0 0
    %687 = vmatpush1.bf16.xpose.msra.mxu0 0
    %688 = vmatprep.subr.bf16.mxu0 0
    %689 = vmatpush1.bf16.xpose.msra.mxu0 0
    %690 = vmatprep.subr.bf16.mxu0 0
    %691 = vmatpush1.bf16.xpose.msra.mxu0 0
    %692 = vmatprep.subr.bf16.mxu0 0
    %693 = vmatpush1.bf16.xpose.msra.mxu0 0
    %694 = vmatprep.subr.bf16.mxu0 0
    %695 = vmatpush1.bf16.xpose.msra.mxu0 0
    %696 = vmatprep.mubr.bf16.mxu0 0
    %697 = vmatmul.mubr.bf16.gmra.mrb[0].mxu0 %v659
    %v698 = vpop.f32.mrb[0].mxu0
    %v699 = vadd.f32 0.0, %v698
    %v700 = vpop.f32.mrb[0].mxu0
    %v701 = vpop.f32.mrb[0].mxu0
    %v702 = vpop.f32.mrb[0].mxu0
    %703 = vdwg.mxu0
    %v704 = vmul.f32 %v547, 0.17677669
    %v705 = vmul.f32 %v599, 0.17677669
    %v706 = vmul.f32 %v649, 0.17677669
    %v707 = vmul.f32 %v699, 0.17677669
    %vm708 = vcmask 64512
    %v709 = vsel %vm708, %v704, -inf
    %710 = vmax.xlane.f32.xlu0 %v709
    %v711 = vpop.xlane.xlu0 %710
    %v712 = vsel %vm708, %v705, -inf
    %713 = vmax.xlane.f32.xlu0 %v712
    %v714 = vpop.xlane.xlu0 %713
    %v715 = vsel %vm708, %v706, -inf
    %716 = vmax.xlane.f32.xlu0 %v715
    %v717 = vpop.xlane.xlu0 %716
    %v718 = vsel %vm708, %v707, -inf
    %719 = vmax.xlane.f32.xlu0 %v718
    %v720 = vpop.xlane.xlu0 %719
    %v721 = vsub.f32 %v704, %v711
    %v722 = vsub.f32 %v705, %v714
    %v723 = vsub.f32 %v706, %v717
    %v724 = vsub.f32 %v707, %v720
    %v725 = vmul.f32 %v721, 1.442695
    %v726 = vpow.pop %v725
    %v727 = vmul.f32 %v722, 1.442695
    %v728 = vpow.pop %v727
    %v729 = vmul.f32 %v723, 1.442695
    %v730 = vpow.pop %v729
    %v731 = vmul.f32 %v724, 1.442695
    %v732 = vpow.pop %v731
    %v733 = vsel %vm708, %v726, 0.0
    %734 = vadd.xlane.f32.xlu0 %v733
    %v735 = vpop.xlane.xlu0 %734
    %v736 = vsel %vm708, %v728, 0.0
    %737 = vadd.xlane.f32.xlu0 %v736
    %v738 = vpop.xlane.xlu0 %737
    %v739 = vsel %vm708, %v730, 0.0
    %740 = vadd.xlane.f32.xlu0 %v739
    %v741 = vpop.xlane.xlu0 %740
    %v742 = vsel %vm708, %v732, 0.0
    %743 = vadd.xlane.f32.xlu0 %v742
    %v744 = vpop.xlane.xlu0 %743
    %v745 = vrcp.pop %v735
    %v746 = vrcp.pop %v738
    %v747 = vrcp.pop %v741
    %v748 = vrcp.pop %v744
    %v749 = vmul.f32 %v726, %v745
    %v750 = vmul.f32 %v728, %v746
    %v751 = vmul.f32 %v730, %v747
    %v752 = vmul.f32 %v732, %v748
    %v753 = vld [vmem:[%s9] sm:$0xf]
    %v754 = vld [vmem:[%s9 + $0x4] sm:$0xf]
    %v755 = vld [vmem:[%s9 + $0x8] sm:$0xf]
    %v756 = vld [vmem:[%s9 + $0xc] sm:$0xf]
    %v757 = vld [vmem:[%s9 + $0x10] sm:$0xf]
    %v758 = vld [vmem:[%s9 + $0x14] sm:$0xf]
    %v759 = vld [vmem:[%s9 + $0x18] sm:$0xf]
    %v760 = vld [vmem:[%s9 + $0x1c] sm:$0xf]
    %v761 = vld [vmem:[%s9 + $0x20] sm:$0xf]
    %v762 = vld [vmem:[%s9 + $0x24] sm:$0xf]
    %v763 = vld [vmem:[%s9 + $0x28] sm:$0xf]
    %v764 = vld [vmem:[%s9 + $0x2c] sm:$0xf]
    %v765 = vld [vmem:[%s9 + $0x30] sm:$0xf]
    %v766 = vld [vmem:[%s9 + $0x34] sm:$0xf]
    %v767 = vld [vmem:[%s9 + $0x38] sm:$0xf]
    %v768 = vld [vmem:[%s9 + $0x3c] sm:$0xf]
    %v769 = vpack.c.bf16 %v749, %v749
    %v770 = vpack.c.bf16 %v498, %v498
    %v772 = vsel %vm708, %v769, 0
    %vm774 = vcmask 1043456
    %v776 = vsel %vm774, %v770, 0
    %778 = vmatprep.subr.bf16.mxu0 0
    %779 = vmatpush1.bf16.msra.mxu0 %v776
    %780 = vmatprep.subr.bf16.mxu0 0
    %781 = vmatpush1.bf16.msra.mxu0 0
    %782 = vmatprep.subr.bf16.mxu0 0
    %783 = vmatpush1.bf16.msra.mxu0 0
    %784 = vmatprep.subr.bf16.mxu0 0
    %785 = vmatpush1.bf16.msra.mxu0 0
    %786 = vmatprep.subr.bf16.mxu0 0
    %787 = vmatpush1.bf16.msra.mxu0 0
    %788 = vmatprep.subr.bf16.mxu0 0
    %789 = vmatpush1.bf16.msra.mxu0 0
    %790 = vmatprep.subr.bf16.mxu0 0
    %791 = vmatpush1.bf16.msra.mxu0 0
    %792 = vmatprep.subr.bf16.mxu0 0
    %793 = vmatpush1.bf16.msra.mxu0 0
    %794 = vmatprep.subr.bf16.mxu0 0
    %795 = vmatpush1.bf16.msra.mxu0 0
    %796 = vmatprep.subr.bf16.mxu0 0
    %797 = vmatpush1.bf16.msra.mxu0 0
    %798 = vmatprep.subr.bf16.mxu0 0
    %799 = vmatpush1.bf16.msra.mxu0 0
    %800 = vmatprep.subr.bf16.mxu0 0
    %801 = vmatpush1.bf16.msra.mxu0 0
    %802 = vmatprep.subr.bf16.mxu0 0
    %803 = vmatpush1.bf16.msra.mxu0 0
    %804 = vmatprep.subr.bf16.mxu0 0
    %805 = vmatpush1.bf16.msra.mxu0 0
    %806 = vmatprep.subr.bf16.mxu0 0
    %807 = vmatpush1.bf16.msra.mxu0 0
    %808 = vmatprep.subr.bf16.mxu0 0
    %809 = vmatpush1.bf16.msra.mxu0 0
    %810 = vmatprep.mubr.bf16.mxu0 0
    %811 = vmatmul.mubr.bf16.gmra.mrb[0].mxu0 %v772
    %v812 = vpop.f32.mrb[0].mxu0
    %v813 = vadd.f32 0.0, %v812
    %v814 = vpop.f32.mrb[0].mxu0
    %v815 = vpop.f32.mrb[0].mxu0
    %v816 = vpop.f32.mrb[0].mxu0
    %817 = vdwg.mxu0
    %v818 = vpack.c.bf16 %v813, %v813
    %v819 = vpack.c.bf16 %v750, %v750
    %821 = vrot.lane.b32.xlu0 %v770, 96
    %v822 = vpop.permute.xlu0 %821
    %v824 = vsel %vm708, %v819, 0
    %v827 = vsel %vm774, %v822, 0
    %829 = vmatprep.subr.bf16.mxu0 0
    %830 = vmatpush1.bf16.msra.mxu0 %v827
    %831 = vmatprep.subr.bf16.mxu0 0
    %832 = vmatpush1.bf16.msra.mxu0 0
    %833 = vmatprep.subr.bf16.mxu0 0
    %834 = vmatpush1.bf16.msra.mxu0 0
    %835 = vmatprep.subr.bf16.mxu0 0
    %836 = vmatpush1.bf16.msra.mxu0 0
    %837 = vmatprep.subr.bf16.mxu0 0
    %838 = vmatpush1.bf16.msra.mxu0 0
    %839 = vmatprep.subr.bf16.mxu0 0
    %840 = vmatpush1.bf16.msra.mxu0 0
    %841 = vmatprep.subr.bf16.mxu0 0
    %842 = vmatpush1.bf16.msra.mxu0 0
    %843 = vmatprep.subr.bf16.mxu0 0
    %844 = vmatpush1.bf16.msra.mxu0 0
    %845 = vmatprep.subr.bf16.mxu0 0
    %846 = vmatpush1.bf16.msra.mxu0 0
    %847 = vmatprep.subr.bf16.mxu0 0
    %848 = vmatpush1.bf16.msra.mxu0 0
    %849 = vmatprep.subr.bf16.mxu0 0
    %850 = vmatpush1.bf16.msra.mxu0 0
    %851 = vmatprep.subr.bf16.mxu0 0
    %852 = vmatpush1.bf16.msra.mxu0 0
    %853 = vmatprep.subr.bf16.mxu0 0
    %854 = vmatpush1.bf16.msra.mxu0 0
    %855 = vmatprep.subr.bf16.mxu0 0
    %856 = vmatpush1.bf16.msra.mxu0 0
    %857 = vmatprep.subr.bf16.mxu0 0
    %858 = vmatpush1.bf16.msra.mxu0 0
    %859 = vmatprep.subr.bf16.mxu0 0
    %860 = vmatpush1.bf16.msra.mxu0 0
    %861 = vmatprep.mubr.bf16.mxu0 0
    %862 = vmatmul.mubr.bf16.gmra.mrb[0].mxu0 %v824
    %v863 = vpop.f32.mrb[0].mxu0
    %v864 = vadd.f32 0.0, %v863
    %v865 = vpop.f32.mrb[0].mxu0
    %v866 = vpop.f32.mrb[0].mxu0
    %v867 = vpop.f32.mrb[0].mxu0
    %868 = vdwg.mxu0
    %v869 = vpack.c.bf16 %v864, %v864
    %v874 = vunpack.c.l.b16 %v757
    %v875 = vunpack.c.l.b16 %v758
    %v876 = vunpack.c.l.b16 %v759
    %v877 = vunpack.c.l.b16 %v760
    %v878 = vpack.c.b16 %v875, %v874
    %v879 = vpack.c.b16 %v877, %v876
    %v883 = vsel %vm505, %v869, 0
    %885 = vmatprep.subr.bf16.mxu0 0
    %886 = vmatpush1.bf16.msra.mxu0 %v878
    %887 = vmatprep.subr.bf16.mxu0 0
    %888 = vmatpush1.bf16.msra.mxu0 %v879
    %889 = vmatprep.subr.bf16.mxu0 0
    %890 = vmatpush1.bf16.msra.mxu0 0
    %891 = vmatprep.subr.bf16.mxu0 0
    %892 = vmatpush1.bf16.msra.mxu0 0
    %893 = vmatprep.subr.bf16.mxu0 0
    %894 = vmatpush1.bf16.msra.mxu0 0
    %895 = vmatprep.subr.bf16.mxu0 0
    %896 = vmatpush1.bf16.msra.mxu0 0
    %897 = vmatprep.subr.bf16.mxu0 0
    %898 = vmatpush1.bf16.msra.mxu0 0
    %899 = vmatprep.subr.bf16.mxu0 0
    %900 = vmatpush1.bf16.msra.mxu0 0
    %901 = vmatprep.subr.bf16.mxu0 0
    %902 = vmatpush1.bf16.msra.mxu0 0
    %903 = vmatprep.subr.bf16.mxu0 0
    %904 = vmatpush1.bf16.msra.mxu0 0
    %905 = vmatprep.subr.bf16.mxu0 0
    %906 = vmatpush1.bf16.msra.mxu0 0
    %907 = vmatprep.subr.bf16.mxu0 0
    %908 = vmatpush1.bf16.msra.mxu0 0
    %909 = vmatprep.subr.bf16.mxu0 0
    %910 = vmatpush1.bf16.msra.mxu0 0
    %911 = vmatprep.subr.bf16.mxu0 0
    %912 = vmatpush1.bf16.msra.mxu0 0
    %913 = vmatprep.subr.bf16.mxu0 0
    %914 = vmatpush1.bf16.msra.mxu0 0
    %915 = vmatprep.subr.bf16.mxu0 0
    %916 = vmatpush1.bf16.msra.mxu0 0
    %917 = vmatprep.mubr.bf16.mxu0 0
    %918 = vmatmul.mubr.bf16.gmra.mrb[0].mxu0 %v883
    %v919 = vpop.f32.mrb[0].mxu0
    %v920 = vadd.f32 0.0, %v919
    %v921 = vpop.f32.mrb[0].mxu0
    %v922 = vpop.f32.mrb[0].mxu0
    %v923 = vpop.f32.mrb[0].mxu0
    %924 = vdwg.mxu0
    %v929 = vunpack.c.l.b16 %v753
    %v930 = vunpack.c.l.b16 %v754
    %v931 = vunpack.c.l.b16 %v755
    %v932 = vunpack.c.l.b16 %v756
    %v933 = vpack.c.b16 %v930, %v929
    %v934 = vpack.c.b16 %v932, %v931
    %v938 = vsel %vm505, %v818, 0
    %940 = vmatprep.subr.bf16.mxu0 0
    %941 = vmatpush1.bf16.msra.mxu0 %v933
    %942 = vmatprep.subr.bf16.mxu0 0
    %943 = vmatpush1.bf16.msra.mxu0 %v934
    %944 = vmatprep.subr.bf16.mxu0 0
    %945 = vmatpush1.bf16.msra.mxu0 0
    %946 = vmatprep.subr.bf16.mxu0 0
    %947 = vmatpush1.bf16.msra.mxu0 0
    %948 = vmatprep.subr.bf16.mxu0 0
    %949 = vmatpush1.bf16.msra.mxu0 0
    %950 = vmatprep.subr.bf16.mxu0 0
    %951 = vmatpush1.bf16.msra.mxu0 0
    %952 = vmatprep.subr.bf16.mxu0 0
    %953 = vmatpush1.bf16.msra.mxu0 0
    %954 = vmatprep.subr.bf16.mxu0 0
    %955 = vmatpush1.bf16.msra.mxu0 0
    %956 = vmatprep.subr.bf16.mxu0 0
    %957 = vmatpush1.bf16.msra.mxu0 0
    %958 = vmatprep.subr.bf16.mxu0 0
    %959 = vmatpush1.bf16.msra.mxu0 0
    %960 = vmatprep.subr.bf16.mxu0 0
    %961 = vmatpush1.bf16.msra.mxu0 0
    %962 = vmatprep.subr.bf16.mxu0 0
    %963 = vmatpush1.bf16.msra.mxu0 0
    %964 = vmatprep.subr.bf16.mxu0 0
    %965 = vmatpush1.bf16.msra.mxu0 0
    %966 = vmatprep.subr.bf16.mxu0 0
    %967 = vmatpush1.bf16.msra.mxu0 0
    %968 = vmatprep.subr.bf16.mxu0 0
    %969 = vmatpush1.bf16.msra.mxu0 0
    %970 = vmatprep.subr.bf16.mxu0 0
    %971 = vmatpush1.bf16.msra.mxu0 0
    %972 = vmatprep.mubr.bf16.mxu0 0
    %973 = vmatmul.mubr.bf16.gmra.mrb[0].mxu0 %v938
    %v974 = vpop.f32.mrb[0].mxu0
    %v975 = vadd.f32 %v920, %v974
    %v976 = vpop.f32.mrb[0].mxu0
    %v977 = vpop.f32.mrb[0].mxu0
    %v978 = vpop.f32.mrb[0].mxu0
    %979 = vdwg.mxu0
    %v980 = vpack.c.bf16 %v751, %v751
    %981 = vrot.lane.b32.xlu0 %v770, 64
    %v982 = vpop.permute.xlu0 %981
    %v984 = vsel %vm708, %v980, 0
    %v987 = vsel %vm774, %v982, 0
    %989 = vmatprep.subr.bf16.mxu0 0
    %990 = vmatpush1.bf16.msra.mxu0 %v987
    %991 = vmatprep.subr.bf16.mxu0 0
    %992 = vmatpush1.bf16.msra.mxu0 0
    %993 = vmatprep.subr.bf16.mxu0 0
    %994 = vmatpush1.bf16.msra.mxu0 0
    %995 = vmatprep.subr.bf16.mxu0 0
    %996 = vmatpush1.bf16.msra.mxu0 0
    %997 = vmatprep.subr.bf16.mxu0 0
    %998 = vmatpush1.bf16.msra.mxu0 0
    %999 = vmatprep.subr.bf16.mxu0 0
    %1000 = vmatpush1.bf16.msra.mxu0 0
    %1001 = vmatprep.subr.bf16.mxu0 0
    %1002 = vmatpush1.bf16.msra.mxu0 0
    %1003 = vmatprep.subr.bf16.mxu0 0
    %1004 = vmatpush1.bf16.msra.mxu0 0
    %1005 = vmatprep.subr.bf16.mxu0 0
    %1006 = vmatpush1.bf16.msra.mxu0 0
    %1007 = vmatprep.subr.bf16.mxu0 0
    %1008 = vmatpush1.bf16.msra.mxu0 0
    %1009 = vmatprep.subr.bf16.mxu0 0
    %1010 = vmatpush1.bf16.msra.mxu0 0
    %1011 = vmatprep.subr.bf16.mxu0 0
    %1012 = vmatpush1.bf16.msra.mxu0 0
    %1013 = vmatprep.subr.bf16.mxu0 0
    %1014 = vmatpush1.bf16.msra.mxu0 0
    %1015 = vmatprep.subr.bf16.mxu0 0
    %1016 = vmatpush1.bf16.msra.mxu0 0
    %1017 = vmatprep.subr.bf16.mxu0 0
    %1018 = vmatpush1.bf16.msra.mxu0 0
    %1019 = vmatprep.subr.bf16.mxu0 0
    %1020 = vmatpush1.bf16.msra.mxu0 0
    %1021 = vmatprep.mubr.bf16.mxu0 0
    %1022 = vmatmul.mubr.bf16.gmra.mrb[0].mxu0 %v984
    %v1023 = vpop.f32.mrb[0].mxu0
    %v1024 = vadd.f32 0.0, %v1023
    %v1025 = vpop.f32.mrb[0].mxu0
    %v1026 = vpop.f32.mrb[0].mxu0
    %v1027 = vpop.f32.mrb[0].mxu0
    %1028 = vdwg.mxu0
    %v1029 = vpack.c.bf16 %v1024, %v1024
    %v1034 = vunpack.c.l.b16 %v761
    %v1035 = vunpack.c.l.b16 %v762
    %v1036 = vunpack.c.l.b16 %v763
    %v1037 = vunpack.c.l.b16 %v764
    %v1038 = vpack.c.b16 %v1035, %v1034
    %v1039 = vpack.c.b16 %v1037, %v1036
    %v1043 = vsel %vm505, %v1029, 0
    %1045 = vmatprep.subr.bf16.mxu0 0
    %1046 = vmatpush1.bf16.msra.mxu0 %v1038
    %1047 = vmatprep.subr.bf16.mxu0 0
    %1048 = vmatpush1.bf16.msra.mxu0 %v1039
    %1049 = vmatprep.subr.bf16.mxu0 0
    %1050 = vmatpush1.bf16.msra.mxu0 0
    %1051 = vmatprep.subr.bf16.mxu0 0
    %1052 = vmatpush1.bf16.msra.mxu0 0
    %1053 = vmatprep.subr.bf16.mxu0 0
    %1054 = vmatpush1.bf16.msra.mxu0 0
    %1055 = vmatprep.subr.bf16.mxu0 0
    %1056 = vmatpush1.bf16.msra.mxu0 0
    %1057 = vmatprep.subr.bf16.mxu0 0
    %1058 = vmatpush1.bf16.msra.mxu0 0
    %1059 = vmatprep.subr.bf16.mxu0 0
    %1060 = vmatpush1.bf16.msra.mxu0 0
    %1061 = vmatprep.subr.bf16.mxu0 0
    %1062 = vmatpush1.bf16.msra.mxu0 0
    %1063 = vmatprep.subr.bf16.mxu0 0
    %1064 = vmatpush1.bf16.msra.mxu0 0
    %1065 = vmatprep.subr.bf16.mxu0 0
    %1066 = vmatpush1.bf16.msra.mxu0 0
    %1067 = vmatprep.subr.bf16.mxu0 0
    %1068 = vmatpush1.bf16.msra.mxu0 0
    %1069 = vmatprep.subr.bf16.mxu0 0
    %1070 = vmatpush1.bf16.msra.mxu0 0
    %1071 = vmatprep.subr.bf16.mxu0 0
    %1072 = vmatpush1.bf16.msra.mxu0 0
    %1073 = vmatprep.subr.bf16.mxu0 0
    %1074 = vmatpush1.bf16.msra.mxu0 0
    %1075 = vmatprep.subr.bf16.mxu0 0
    %1076 = vmatpush1.bf16.msra.mxu0 0
    %1077 = vmatprep.mubr.bf16.mxu0 0
    %1078 = vmatmul.mubr.bf16.gmra.mrb[0].mxu0 %v1043
    %v1079 = vpop.f32.mrb[0].mxu0
    %v1080 = vadd.f32 0.0, %v1079
    %v1081 = vpop.f32.mrb[0].mxu0
    %v1082 = vpop.f32.mrb[0].mxu0
    %v1083 = vpop.f32.mrb[0].mxu0
    %1084 = vdwg.mxu0
    %v1085 = vadd.f32 %v975, %v1080
    %v1086 = vpack.c.bf16 %v752, %v752
    %1087 = vrot.lane.b32.xlu0 %v770, 32
    %v1088 = vpop.permute.xlu0 %1087
    %v1090 = vsel %vm708, %v1086, 0
    %v1093 = vsel %vm774, %v1088, 0
    %1095 = vmatprep.subr.bf16.mxu0 0
    %1096 = vmatpush1.bf16.msra.mxu0 %v1093
    %1097 = vmatprep.subr.bf16.mxu0 0
    %1098 = vmatpush1.bf16.msra.mxu0 0
    %1099 = vmatprep.subr.bf16.mxu0 0
    %1100 = vmatpush1.bf16.msra.mxu0 0
    %1101 = vmatprep.subr.bf16.mxu0 0
    %1102 = vmatpush1.bf16.msra.mxu0 0
    %1103 = vmatprep.subr.bf16.mxu0 0
    %1104 = vmatpush1.bf16.msra.mxu0 0
    %1105 = vmatprep.subr.bf16.mxu0 0
    %1106 = vmatpush1.bf16.msra.mxu0 0
    %1107 = vmatprep.subr.bf16.mxu0 0
    %1108 = vmatpush1.bf16.msra.mxu0 0
    %1109 = vmatprep.subr.bf16.mxu0 0
    %1110 = vmatpush1.bf16.msra.mxu0 0
    %1111 = vmatprep.subr.bf16.mxu0 0
    %1112 = vmatpush1.bf16.msra.mxu0 0
    %1113 = vmatprep.subr.bf16.mxu0 0
    %1114 = vmatpush1.bf16.msra.mxu0 0
    %1115 = vmatprep.subr.bf16.mxu0 0
    %1116 = vmatpush1.bf16.msra.mxu0 0
    %1117 = vmatprep.subr.bf16.mxu0 0
    %1118 = vmatpush1.bf16.msra.mxu0 0
    %1119 = vmatprep.subr.bf16.mxu0 0
    %1120 = vmatpush1.bf16.msra.mxu0 0
    %1121 = vmatprep.subr.bf16.mxu0 0
    %1122 = vmatpush1.bf16.msra.mxu0 0
    %1123 = vmatprep.subr.bf16.mxu0 0
    %1124 = vmatpush1.bf16.msra.mxu0 0
    %1125 = vmatprep.subr.bf16.mxu0 0
    %1126 = vmatpush1.bf16.msra.mxu0 0
    %1127 = vmatprep.mubr.bf16.mxu0 0
    %1128 = vmatmul.mubr.bf16.gmra.mrb[0].mxu0 %v1090
    %v1129 = vpop.f32.mrb[0].mxu0
    %v1130 = vadd.f32 0.0, %v1129
    %v1131 = vpop.f32.mrb[0].mxu0
    %v1132 = vpop.f32.mrb[0].mxu0
    %v1133 = vpop.f32.mrb[0].mxu0
    %1134 = vdwg.mxu0
    %v1135 = vpack.c.bf16 %v1130, %v1130
    %v1140 = vunpack.c.l.b16 %v765
    %v1141 = vunpack.c.l.b16 %v766
    %v1142 = vunpack.c.l.b16 %v767
    %v1143 = vunpack.c.l.b16 %v768
    %v1144 = vpack.c.b16 %v1141, %v1140
    %v1145 = vpack.c.b16 %v1143, %v1142
    %v1149 = vsel %vm505, %v1135, 0
    %1151 = vmatprep.subr.bf16.mxu0 0
    %1152 = vmatpush1.bf16.msra.mxu0 %v1144
    %1153 = vmatprep.subr.bf16.mxu0 0
    %1154 = vmatpush1.bf16.msra.mxu0 %v1145
    %1155 = vmatprep.subr.bf16.mxu0 0
    %1156 = vmatpush1.bf16.msra.mxu0 0
    %1157 = vmatprep.subr.bf16.mxu0 0
    %1158 = vmatpush1.bf16.msra.mxu0 0
    %1159 = vmatprep.subr.bf16.mxu0 0
    %1160 = vmatpush1.bf16.msra.mxu0 0
    %1161 = vmatprep.subr.bf16.mxu0 0
    %1162 = vmatpush1.bf16.msra.mxu0 0
    %1163 = vmatprep.subr.bf16.mxu0 0
    %1164 = vmatpush1.bf16.msra.mxu0 0
    %1165 = vmatprep.subr.bf16.mxu0 0
    %1166 = vmatpush1.bf16.msra.mxu0 0
    %1167 = vmatprep.subr.bf16.mxu0 0
    %1168 = vmatpush1.bf16.msra.mxu0 0
    %1169 = vmatprep.subr.bf16.mxu0 0
    %1170 = vmatpush1.bf16.msra.mxu0 0
    %1171 = vmatprep.subr.bf16.mxu0 0
    %1172 = vmatpush1.bf16.msra.mxu0 0
    %1173 = vmatprep.subr.bf16.mxu0 0
    %1174 = vmatpush1.bf16.msra.mxu0 0
    %1175 = vmatprep.subr.bf16.mxu0 0
    %1176 = vmatpush1.bf16.msra.mxu0 0
    %1177 = vmatprep.subr.bf16.mxu0 0
    %1178 = vmatpush1.bf16.msra.mxu0 0
    %1179 = vmatprep.subr.bf16.mxu0 0
    %1180 = vmatpush1.bf16.msra.mxu0 0
    %1181 = vmatprep.subr.bf16.mxu0 0
    %1182 = vmatpush1.bf16.msra.mxu0 0
    %1183 = vmatprep.mubr.bf16.mxu0 0
    %1184 = vmatmul.mubr.bf16.gmra.mrb[0].mxu0 %v1149
    %v1185 = vpop.f32.mrb[0].mxu0
    %v1186 = vadd.f32 0.0, %v1185
    %v1187 = vpop.f32.mrb[0].mxu0
    %v1188 = vpop.f32.mrb[0].mxu0
    %v1189 = vpop.f32.mrb[0].mxu0
    %1190 = vdwg.mxu0
    %v1191 = vadd.f32 %v1085, %v1186
    %v1192 = vld [vmem:[%s10] sm:$0x1]
    %v1194 = vlaneseq
    %v1195 = vshrl.u32 %v1194, 7
    %v1196 = vsub.s32 0, %v1195
    %v1197 = vrot.slane %v1192, %v1196
    %v1199 = vadd.f32 %v1191, %v1197
    %v1200 = vld [vmem:[%s11] sm:$0xf]
    %v1201 = vld [vmem:[%s11 + $0x4] sm:$0xf]
    %v1202 = vld [vmem:[%s11 + $0x8] sm:$0xf]
    %v1203 = vld [vmem:[%s11 + $0xc] sm:$0xf]
    %v1204 = vld [vmem:[%s11 + $0x10] sm:$0xf]
    %v1205 = vld [vmem:[%s11 + $0x14] sm:$0xf]
    %v1206 = vld [vmem:[%s11 + $0x18] sm:$0xf]
    %v1207 = vld [vmem:[%s11 + $0x1c] sm:$0xf]
    %v1208 = vld [vmem:[%s11 + $0x20] sm:$0xf]
    %v1209 = vld [vmem:[%s11 + $0x24] sm:$0xf]
    %v1210 = vld [vmem:[%s11 + $0x28] sm:$0xf]
    %v1211 = vld [vmem:[%s11 + $0x2c] sm:$0xf]
    %v1212 = vld [vmem:[%s11 + $0x30] sm:$0xf]
    %v1213 = vld [vmem:[%s11 + $0x34] sm:$0xf]
    %v1214 = vld [vmem:[%s11 + $0x38] sm:$0xf]
    %v1215 = vld [vmem:[%s11 + $0x3c] sm:$0xf]
    %v1216 = vld [vmem:[%s11 + $0x40] sm:$0xf]
    %v1217 = vld [vmem:[%s11 + $0x44] sm:$0xf]
    %v1218 = vld [vmem:[%s11 + $0x48] sm:$0xf]
    %v1219 = vld [vmem:[%s11 + $0x4c] sm:$0xf]
    %v1220 = vld [vmem:[%s11 + $0x50] sm:$0xf]
    %v1221 = vld [vmem:[%s11 + $0x54] sm:$0xf]
    %v1222 = vld [vmem:[%s11 + $0x58] sm:$0xf]
    %v1223 = vld [vmem:[%s11 + $0x5c] sm:$0xf]
    %v1224 = vld [vmem:[%s11 + $0x60] sm:$0xf]
    %v1225 = vld [vmem:[%s11 + $0x64] sm:$0xf]
    %v1226 = vld [vmem:[%s11 + $0x68] sm:$0xf]
    %v1227 = vld [vmem:[%s11 + $0x6c] sm:$0xf]
    %v1228 = vld [vmem:[%s11 + $0x70] sm:$0xf]
    %v1229 = vld [vmem:[%s11 + $0x74] sm:$0xf]
    %v1230 = vld [vmem:[%s11 + $0x78] sm:$0xf]
    %v1231 = vld [vmem:[%s11 + $0x7c] sm:$0xf]
    %v1232 = vpack.c.bf16 %v1199, %v1199
    %v1249 = vunpack.c.l.b16 %v1216
    %v1250 = vunpack.c.l.b16 %v1217
    %v1251 = vunpack.c.l.b16 %v1218
    %v1252 = vunpack.c.l.b16 %v1219
    %v1253 = vunpack.c.l.b16 %v1220
    %v1254 = vunpack.c.l.b16 %v1221
    %v1255 = vunpack.c.l.b16 %v1222
    %v1256 = vunpack.c.l.b16 %v1223
    %v1257 = vunpack.c.l.b16 %v1224
    %v1258 = vunpack.c.l.b16 %v1225
    %v1259 = vunpack.c.l.b16 %v1226
    %v1260 = vunpack.c.l.b16 %v1227
    %v1261 = vunpack.c.l.b16 %v1228
    %v1262 = vunpack.c.l.b16 %v1229
    %v1263 = vunpack.c.l.b16 %v1230
    %v1264 = vunpack.c.l.b16 %v1231
    %v1265 = vpack.c.b16 %v1250, %v1249
    %v1266 = vpack.c.b16 %v1252, %v1251
    %v1267 = vpack.c.b16 %v1254, %v1253
    %v1268 = vpack.c.b16 %v1256, %v1255
    %v1269 = vpack.c.b16 %v1258, %v1257
    %v1270 = vpack.c.b16 %v1260, %v1259
    %v1271 = vpack.c.b16 %v1262, %v1261
    %v1272 = vpack.c.b16 %v1264, %v1263
    %1281 = vmatprep.subr.bf16.mxu0 0
    %1282 = vmatpush1.bf16.msra.mxu0 %v1265
    %1283 = vmatprep.subr.bf16.mxu0 0
    %1284 = vmatpush1.bf16.msra.mxu0 %v1266
    %1285 = vmatprep.subr.bf16.mxu0 0
    %1286 = vmatpush1.bf16.msra.mxu0 %v1267
    %1287 = vmatprep.subr.bf16.mxu0 0
    %1288 = vmatpush1.bf16.msra.mxu0 %v1268
    %1289 = vmatprep.subr.bf16.mxu0 0
    %1290 = vmatpush1.bf16.msra.mxu0 %v1269
    %1291 = vmatprep.subr.bf16.mxu0 0
    %1292 = vmatpush1.bf16.msra.mxu0 %v1270
    %1293 = vmatprep.subr.bf16.mxu0 0
    %1294 = vmatpush1.bf16.msra.mxu0 %v1271
    %1295 = vmatprep.subr.bf16.mxu0 0
    %1296 = vmatpush1.bf16.msra.mxu0 %v1272
    %1297 = vmatprep.subr.bf16.mxu0 0
    %1298 = vmatpush1.bf16.msra.mxu0 0
    %1299 = vmatprep.subr.bf16.mxu0 0
    %1300 = vmatpush1.bf16.msra.mxu0 0
    %1301 = vmatprep.subr.bf16.mxu0 0
    %1302 = vmatpush1.bf16.msra.mxu0 0
    %1303 = vmatprep.subr.bf16.mxu0 0
    %1304 = vmatpush1.bf16.msra.mxu0 0
    %1305 = vmatprep.subr.bf16.mxu0 0
    %1306 = vmatpush1.bf16.msra.mxu0 0
    %1307 = vmatprep.subr.bf16.mxu0 0
    %1308 = vmatpush1.bf16.msra.mxu0 0
    %1309 = vmatprep.subr.bf16.mxu0 0
    %1310 = vmatpush1.bf16.msra.mxu0 0
    %1311 = vmatprep.subr.bf16.mxu0 0
    %1312 = vmatpush1.bf16.msra.mxu0 0
    %1313 = vmatprep.mubr.bf16.mxu0 0
    %1314 = vmatmul.mubr.bf16.gmra.mrb[0].mxu0 %v1232
    %v1315 = vpop.f32.mrb[0].mxu0
    %v1316 = vadd.f32 0.0, %v1315
    %v1317 = vpop.f32.mrb[0].mxu0
    %v1318 = vpop.f32.mrb[0].mxu0
    %v1319 = vpop.f32.mrb[0].mxu0
    %1320 = vdwg.mxu0
    %v1337 = vunpack.c.l.b16 %v1200
    %v1338 = vunpack.c.l.b16 %v1201
    %v1339 = vunpack.c.l.b16 %v1202
    %v1340 = vunpack.c.l.b16 %v1203
    %v1341 = vunpack.c.l.b16 %v1204
    %v1342 = vunpack.c.l.b16 %v1205
    %v1343 = vunpack.c.l.b16 %v1206
    %v1344 = vunpack.c.l.b16 %v1207
    %v1345 = vunpack.c.l.b16 %v1208
    %v1346 = vunpack.c.l.b16 %v1209
    %v1347 = vunpack.c.l.b16 %v1210
    %v1348 = vunpack.c.l.b16 %v1211
    %v1349 = vunpack.c.l.b16 %v1212
    %v1350 = vunpack.c.l.b16 %v1213
    %v1351 = vunpack.c.l.b16 %v1214
    %v1352 = vunpack.c.l.b16 %v1215
    %v1353 = vpack.c.b16 %v1338, %v1337
    %v1354 = vpack.c.b16 %v1340, %v1339
    %v1355 = vpack.c.b16 %v1342, %v1341
    %v1356 = vpack.c.b16 %v1344, %v1343
    %v1357 = vpack.c.b16 %v1346, %v1345
    %v1358 = vpack.c.b16 %v1348, %v1347
    %v1359 = vpack.c.b16 %v1350, %v1349
    %v1360 = vpack.c.b16 %v1352, %v1351
    %1369 = vmatprep.subr.bf16.mxu0 0
    %1370 = vmatpush1.bf16.msra.mxu0 %v1353
    %1371 = vmatprep.subr.bf16.mxu0 0
    %1372 = vmatpush1.bf16.msra.mxu0 %v1354
    %1373 = vmatprep.subr.bf16.mxu0 0
    %1374 = vmatpush1.bf16.msra.mxu0 %v1355
    %1375 = vmatprep.subr.bf16.mxu0 0
    %1376 = vmatpush1.bf16.msra.mxu0 %v1356
    %1377 = vmatprep.subr.bf16.mxu0 0
    %1378 = vmatpush1.bf16.msra.mxu0 %v1357
    %1379 = vmatprep.subr.bf16.mxu0 0
    %1380 = vmatpush1.bf16.msra.mxu0 %v1358
    %1381 = vmatprep.subr.bf16.mxu0 0
    %1382 = vmatpush1.bf16.msra.mxu0 %v1359
    %1383 = vmatprep.subr.bf16.mxu0 0
    %1384 = vmatpush1.bf16.msra.mxu0 %v1360
    %1385 = vmatprep.subr.bf16.mxu0 0
    %1386 = vmatpush1.bf16.msra.mxu0 0
    %1387 = vmatprep.subr.bf16.mxu0 0
    %1388 = vmatpush1.bf16.msra.mxu0 0
    %1389 = vmatprep.subr.bf16.mxu0 0
    %1390 = vmatpush1.bf16.msra.mxu0 0
    %1391 = vmatprep.subr.bf16.mxu0 0
    %1392 = vmatpush1.bf16.msra.mxu0 0
    %1393 = vmatprep.subr.bf16.mxu0 0
    %1394 = vmatpush1.bf16.msra.mxu0 0
    %1395 = vmatprep.subr.bf16.mxu0 0
    %1396 = vmatpush1.bf16.msra.mxu0 0
    %1397 = vmatprep.subr.bf16.mxu0 0
    %1398 = vmatpush1.bf16.msra.mxu0 0
    %1399 = vmatprep.subr.bf16.mxu0 0
    %1400 = vmatpush1.bf16.msra.mxu0 0
    %1401 = vmatprep.mubr.bf16.mxu0 0
    %1402 = vmatmul.mubr.bf16.gmra.mrb[0].mxu0 %v168
    %v1403 = vpop.f32.mrb[0].mxu0
    %v1404 = vadd.f32 %v1316, %v1403
    %v1405 = vpop.f32.mrb[0].mxu0
    %v1406 = vpop.f32.mrb[0].mxu0
    %v1407 = vpop.f32.mrb[0].mxu0
    %1408 = vdwg.mxu0
    %v1409 = vld [vmem:[%s12] sm:$0x1]
    %v1411 = vlaneseq
    %v1412 = vshrl.u32 %v1411, 7
    %v1413 = vsub.s32 0, %v1412
    %v1414 = vrot.slane %v1409, %v1413
    %v1416 = vadd.f32 %v1404, %v1414
    %v1417 = vmul.f32 %v1416, 0.5
    %v1418 = vmul.f32 %v1416, 0.044715
    %v1419 = vmul.f32 %v1418, %v1416
    %v1420 = vmul.f32 %v1419, %v1416
    %v1421 = vadd.f32 %v1416, %v1420
    %v1422 = vmul.f32 %v1421, 0.7978846
    %v1423 = vtanh.pop %v1422
    %v1424 = vadd.f32 %v1423, 1.0
    %v1425 = vmul.f32 %v1417, %v1424
    %1426 = vst [vmem:[#allocation2] sm:$0xff] %v1425
    %1427 = vst [vmem:[#allocation5] sm:$0xff] %v167
    %v1428 = vpack.c.bf16 %v1425, %v1425
    %1429 = vmatprep.subr.bf16.mxu0 0
    %1430 = vmatpush1.bf16.xpose.msra.mxu0 %v1428
    %1431 = vmatprep.subr.bf16.mxu0 0
    %1432 = vmatpush1.bf16.xpose.msra.mxu0 0
    %1433 = vmatprep.subr.bf16.mxu0 0
    %1434 = vmatpush1.bf16.xpose.msra.mxu0 0
    %1435 = vmatprep.subr.bf16.mxu0 0
    %1436 = vmatpush1.bf16.xpose.msra.mxu0 0
    %1437 = vmatprep.subr.bf16.mxu0 0
    %1438 = vmatpush1.bf16.xpose.msra.mxu0 0
    %1439 = vmatprep.subr.bf16.mxu0 0
    %1440 = vmatpush1.bf16.xpose.msra.mxu0 0
    %1441 = vmatprep.subr.bf16.mxu0 0
    %1442 = vmatpush1.bf16.xpose.msra.mxu0 0
    %1443 = vmatprep.subr.bf16.mxu0 0
    %1444 = vmatpush1.bf16.xpose.msra.mxu0 0
    %1445 = vmatprep.subr.bf16.mxu0 0
    %1446 = vmatpush1.bf16.xpose.msra.mxu0 0
    %1447 = vmatprep.subr.bf16.mxu0 0
    %1448 = vmatpush1.bf16.xpose.msra.mxu0 0
    %1449 = vmatprep.subr.bf16.mxu0 0
    %1450 = vmatpush1.bf16.xpose.msra.mxu0 0
    %1451 = vmatprep.subr.bf16.mxu0 0
    %1452 = vmatpush1.bf16.xpose.msra.mxu0 0
    %1453 = vmatprep.subr.bf16.mxu0 0
    %1454 = vmatpush1.bf16.xpose.msra.mxu0 0
    %1455 = vmatprep.subr.bf16.mxu0 0
    %1456 = vmatpush1.bf16.xpose.msra.mxu0 0
    %1457 = vmatprep.subr.bf16.mxu0 0
    %1458 = vmatpush1.bf16.xpose.msra.mxu0 0
    %1459 = vmatprep.subr.bf16.mxu0 0
    %1460 = vmatpush1.bf16.xpose.msra.mxu0 0
    %1461 = vmatprep.mubr.bf16.mxu0 0
    %1462 = vmatmul.mubr.bf16.gmra.mrb[0].mxu0 %v169
    %v1463 = vpop.f32.mrb[0].mxu0
    %v1464 = vadd.f32 0.0, %v1463
    %v1465 = vpop.f32.mrb[0].mxu0
    %v1466 = vpop.f32.mrb[0].mxu0
    %v1467 = vpop.f32.mrb[0].mxu0
    %1468 = vdwg.mxu0
    %v1469 = vsel %vm708, %v1464, -inf
    %1470 = vmax.xlane.f32.xlu0 %v1469
    %v1471 = vpop.xlane.xlu0 %1470
    %v1472 = vsub.f32 %v1464, %v1471
    %v1473 = vmul.f32 %v1472, 1.442695
    %v1474 = vpow.pop %v1473
    %v1475 = vsel %vm708, %v1474, 0.0
    %1476 = vadd.xlane.f32.xlu0 %v1475
    %v1477 = vpop.xlane.xlu0 %1476
    %v1478 = vlog2.pop %v1477
    %v1479 = vmul.f32 %v1478, 0.6931472
    %v1480 = vadd.f32 %v1471, %v1479
    %v1481 = vlaneseq
    %v1482 = vshrl.u32 %v1481, 7
    %v1483 = vlaneseq
    %v1484 = vand.u32 %v1483, 127
    %vm1485 = vcmp.eq.s32.totalorder %v1482, %v1484
    %v1486 = vsel %vm1485, %v1464, 0.0
    %v1487 = vsel %vm708, %v1486, 0.0
    %1488 = vadd.xlane.f32.xlu0 %v1487
    %v1489 = vpop.xlane.xlu0 %1488
    %v1490 = vsub.f32 %v1480, %v1489
    %vm1491 = vcmask 7168
    %v1492 = vsel %vm1491, %v1490, 0.0
    %1493 = vadd.xlane.f32.xlu0 %v1492
    %v1494 = vpop.xlane.xlu0 %1493
    %v1495 = vrot.slane %v1494, 4
    %v1496 = vadd.f32 %v1494, %v1495
    %v1497 = vrot.slane %v1496, 2
    %v1498 = vadd.f32 %v1496, %v1497
    %v1499 = vrot.slane %v1498, 1
    %v1500 = vadd.f32 %v1498, %v1499
    %s1501 = vtos %v1500
    %s1502 = smul.f32 %s1501, 0.125
    %s1503 = scalar_lea.smem [#allocation7], 0
    %1504 = sst [smem:[%s1503]] %s1502
    // Predicated region
    $region54: #{_lambda_.1} parent=1 // pred_check
      _
    $region55: #{_lambda_.1} parent=1 // pred_check_branch
      %1506 = sbr.rel (0) target = $region57
    $region56: #{_lambda_.1} parent=1 // pred_region
      %s1508 = ssub.s32 128, 128
      %1509 = vsyncadd [#allocation3], %s1508
      %s1511 = sshll.u32 [#allocation2], 4
      %s1512 = int_to_ptr.vmem [resolvable:$true] %s1511
      %1514 = dma.vmem_to_hbm [thread:$0]  %s1512, 128, %s13, [#allocation3]
    $region57: #{_lambda_.1} parent=1 // pred_fallthru
      _
    // Predicated region
    $region58: #{_lambda_.1} parent=1 // pred_check
      _
    $region59: #{_lambda_.1} parent=1 // pred_check_branch
      %1516 = sbr.rel (0) target = $region61
    $region60: #{_lambda_.1} parent=1 // pred_region
      %s1518 = ssub.s32 128, 128
      %1519 = vsyncadd [#allocation6], %s1518
      %s1521 = sshll.u32 [#allocation5], 4
      %s1522 = int_to_ptr.vmem [resolvable:$true] %s1521
      %1524 = dma.vmem_to_hbm [thread:$0]  %s1522, 128, %s14, [#allocation6]
    $region61: #{_lambda_.1} parent=1 // pred_fallthru
      _
    // Predicated region
    $region62: #{_lambda_.1} parent=1 // pred_check
      _
    $region63: #{_lambda_.1} parent=1 // pred_check_branch
      %1526 = sbr.rel (0) target = $region65
    $region64: #{_lambda_.1} parent=1 // pred_region
      %s1528 = ssub.s32 16, 16
      %1529 = vsyncadd [#allocation4], %s1528
      %1532 = dma.smem_to_hbm [#allocation7], 16, %s15, [#allocation4]
    $region65: #{_lambda_.1} parent=1 // pred_fallthru
      _
    // Predicated region
    $region66: #{_lambda_.1} parent=1 // pred_check
      _
    $region67: #{_lambda_.1} parent=1 // pred_check_branch
      %1534 = sbr.rel (0) target = $region69
    $region68: #{_lambda_.1} parent=1 // pred_region
      %1535 = dma.done [#allocation3], 128
    $region69: #{_lambda_.1} parent=1 // pred_fallthru
      _
    // Predicated region
    $region70: #{_lambda_.1} parent=1 // pred_check
      _
    $region71: #{_lambda_.1} parent=1 // pred_check_branch
      %1537 = sbr.rel (0) target = $region73
    $region72: #{_lambda_.1} parent=1 // pred_region
      %1538 = dma.done [#allocation6], 128
    $region73: #{_lambda_.1} parent=1 // pred_fallthru
      _
    // Predicated region
    $region74: #{_lambda_.1} parent=1 // pred_check
      _
    $region75: #{_lambda_.1} parent=1 // pred_check_branch
      %1540 = sbr.rel (0) target = $region77
    $region76: #{_lambda_.1} parent=1 // pred_region
      %1541 = dma.done [#allocation4], 16
    $region77: #{_lambda_.1} parent=1 // pred_fallthru
      _
    %1542 = sfence
    %1543 = vsyncpa [#allocation3], 1
    %1544 = vsyncpa [#allocation6], 1
    %1545 = vsyncpa [#allocation4], 1

</llo_original>
